<compile_context>
chip_gen: v7x
topology: tpu7x:2x2x1
jax: 0.10.0
libtpu: 0.0.40
codegen_flags: <defaults>
</compile_context>

<pallas_src>
import functools

import jax
import jax.numpy as jnp
from jax.experimental import pallas as pl
from jax.experimental.pallas import tpu as pltpu


# ----------------------------------------------------------------------------
# Tiling helpers
# ----------------------------------------------------------------------------
def _round_up(x, m):
    return ((x + m - 1) // m) * m


def _tile_m(m, pref=256):
    """(tile, padded) for the row dimension.  A single full-dim block is
    always layout-legal, so small M needs no padding."""
    if m <= pref:
        return m, m
    return pref, _round_up(m, pref)


def _pad_n(n, pref=256):
    """Padded (lane-dense) output dimension: multiple of 128."""
    np_ = _round_up(n, 128)
    if np_ > pref:
        np_ = _round_up(n, pref)
    return np_


def _pad_k(k):
    """Padded contraction dim.  Small K stays a single full block (no
    padding needed); very large K is tiled at 512."""
    return k if k <= 2048 else _round_up(k, 512)


# ----------------------------------------------------------------------------
# Pallas kernel 1: tiled  out = [relu](x @ w + b)  with K-reduction grid axis
# ----------------------------------------------------------------------------
def _matmul_bias_act_kernel(x_ref, w_ref, b_ref, o_ref, acc_ref, *, apply_relu):
    @pl.when(pl.program_id(2) == 0)
    def _():
        acc_ref[...] = jnp.zeros_like(acc_ref)

    acc_ref[...] += jnp.dot(x_ref[...], w_ref[...],
                            preferred_element_type=jnp.float32)

    @pl.when(pl.program_id(2) == pl.num_programs(2) - 1)
    def _():
        r = acc_ref[...] + b_ref[...]          # (1, TN) broadcasts over rows
        if apply_relu:
            r = jnp.maximum(r, 0.0)
        o_ref[...] = r.astype(o_ref.dtype)


def matmul_bias_act(x, w_pad, b_pad, *, apply_relu, out_dtype=jnp.bfloat16):
    """x: (M, K); w_pad: (Kp, Np) bf16 (pre-padded); b_pad: (1, Np) f32."""
    M, K = x.shape
    Kp, Np = w_pad.shape
    TM, Mp = _tile_m(M)
    TN = Np if Np <= 256 else 256
    TK = Kp if Kp <= 2048 else 512

    if (Mp, Kp) != (M, K):                     # only hit for very large M/K
        x = jnp.pad(x, ((0, Mp - M), (0, Kp - K)))
    x = x.astype(jnp.bfloat16)

    out = pl.pallas_call(
        functools.partial(_matmul_bias_act_kernel, apply_relu=apply_relu),
        out_shape=jax.ShapeDtypeStruct((Mp, Np), out_dtype),
        grid_spec=pltpu.PrefetchScalarGridSpec(
            num_scalar_prefetch=0,
            grid=(Mp // TM, Np // TN, Kp // TK),
            in_specs=[
                pl.BlockSpec((TM, TK), lambda i, j, k: (i, k)),
                pl.BlockSpec((TK, TN), lambda i, j, k: (k, j)),
                pl.BlockSpec((1, TN), lambda i, j, k: (0, j)),
            ],
            out_specs=pl.BlockSpec((TM, TN), lambda i, j, k: (i, j)),
            scratch_shapes=[pltpu.VMEM((TM, TN), jnp.float32)],
        ),
        compiler_params=pltpu.CompilerParams(
            dimension_semantics=("parallel", "parallel", "arbitrary")),
    )(x, w_pad, b_pad)
    return out[:M]


# ----------------------------------------------------------------------------
# Pallas kernel 2: fused fc1(+ReLU) + fc2 — hidden activations stay in VMEM
# ----------------------------------------------------------------------------
def _fused_fc_kernel(x_ref, w1_ref, b1_ref, w2_ref, b2_ref, o_ref):
    h = jnp.dot(x_ref[...], w1_ref[...], preferred_element_type=jnp.float32)
    h = jnp.maximum(h + b1_ref[...], 0.0)
    q = jnp.dot(h.astype(w2_ref.dtype), w2_ref[...],
                preferred_element_type=jnp.float32)
    o_ref[...] = (q + b2_ref[...]).astype(o_ref.dtype)


def fused_fc(x, w1_pad, b1_pad, w2_pad, b2_pad, action_dim):
    """x: (M, K1); w1_pad: (K1, 512) bf16; w2_pad: (512, Ap) bf16."""
    M, K1 = x.shape
    K1w, H = w1_pad.shape
    assert K1w == K1
    _, Ap = w2_pad.shape
    TM, Mp = _tile_m(M)
    if Mp != M:
        x = jnp.pad(x, ((0, Mp - M), (0, 0)))
    x = x.astype(jnp.bfloat16)

    out = pl.pallas_call(
        _fused_fc_kernel,
        out_shape=jax.ShapeDtypeStruct((Mp, Ap), jnp.float32),
        grid_spec=pltpu.PrefetchScalarGridSpec(
            num_scalar_prefetch=0,
            grid=(Mp // TM,),
            in_specs=[
                pl.BlockSpec((TM, K1), lambda i: (i, 0)),
                pl.BlockSpec((K1, H), lambda i: (0, 0)),
                pl.BlockSpec((1, H), lambda i: (0, 0)),
                pl.BlockSpec((H, Ap), lambda i: (0, 0)),
                pl.BlockSpec((1, Ap), lambda i: (0, 0)),
            ],
            out_specs=pl.BlockSpec((TM, Ap), lambda i: (i, 0)),
        ),
        compiler_params=pltpu.CompilerParams(
            dimension_semantics=("parallel",)),
    )(x, w1_pad, b1_pad, w2_pad, b2_pad)
    return out[:M, :action_dim]


# ----------------------------------------------------------------------------
# Conv glue: channel-last im2col (single stack, no transpose) + Pallas matmul
# ----------------------------------------------------------------------------
def _im2col_nhwc(x, k, s):
    n, h, w, c = x.shape
    oh = (h - k) // s + 1
    ow = (w - k) // s + 1
    patches = [x[:, i:i + s * oh:s, j:j + s * ow:s, :]
               for i in range(k) for j in range(k)]
    cols = jnp.stack(patches, axis=3)                 # (n, oh, ow, k*k, c)
    return cols.reshape(n * oh * ow, k * k * c), oh, ow
    # TODO(synk): fold the patch gather into the Pallas kernel itself to
    # remove this single extra HBM materialization per conv layer.


def conv2d_relu_nhwc(x, w_pad, b_pad, *, out_channels, k, s):
    n = x.shape[0]
    cols, oh, ow = _im2col_nhwc(x, k, s)              # (n*oh*ow, k*k*c) bf16
    out = matmul_bias_act(cols, w_pad, b_pad, apply_relu=True,
                          out_dtype=jnp.bfloat16)     # (n*oh*ow, Np)
    return out.reshape(n, oh, ow, -1)[..., :out_channels]   # drop ch padding


# ----------------------------------------------------------------------------
# Parameters: raw PyTorch layouts + one-time kernel-friendly preparation
# ----------------------------------------------------------------------------
def conv_sizes(obs_dim):
    H, W, C = obs_dim

    def o(v, k, s):
        return (v - k) // s + 1

    h1, w1 = o(H, 8, 4), o(W, 8, 4)
    h2, w2 = o(h1, 4, 2), o(w1, 4, 2)
    h3, w3 = o(h2, 3, 1), o(w2, 3, 1)
    return (h1, w1), (h2, w2), (h3, w3)


def init_params(key, obs_dim, action_dim):
    """Raw parameters in PyTorch layouts (OIHW convs, (out,in) linears)."""
    H, W, C = obs_dim
    _, _, (h3, w3) = conv_sizes(obs_dim)
    conv_out = 64 * h3 * w3
    ks = jax.random.split(key, 10)
    return {
        "conv1_w": jax.random.normal(ks[0], (32, C, 8, 8), jnp.float32) * 0.05,
        "conv1_b": jax.random.normal(ks[1], (32,), jnp.float32) * 0.05,
        "conv2_w": jax.random.normal(ks[2], (64, 32, 4, 4), jnp.float32) * 0.05,
        "conv2_b": jax.random.normal(ks[3], (64,), jnp.float32) * 0.05,
        "conv3_w": jax.random.normal(ks[4], (64, 64, 3, 3), jnp.float32) * 0.05,
        "conv3_b": jax.random.normal(ks[5], (64,), jnp.float32) * 0.05,
        "fc1_w": jax.random.normal(ks[6], (512, conv_out), jnp.float32) * 0.05,
        "fc1_b": jax.random.normal(ks[7], (512,), jnp.float32) * 0.05,
        "fc2_w": jax.random.normal(ks[8], (action_dim, 512), jnp.float32) * 0.05,
        "fc2_b": jax.random.normal(ks[9], (action_dim,), jnp.float32) * 0.05,
    }


def prepare_params(raw, obs_dim):
    """One-time transpose/permute/pad/bf16-cast of all weights for kernels."""
    _, _, (h3, w3) = conv_sizes(obs_dim)

    def prep_conv(w, b, scale=1.0):
        oc, ic, kh, kw = w.shape
        # (OC, IC, kh, kw) -> (kh, kw, IC, OC) -> (kh*kw*IC, OC); matches the
        # channel-last im2col feature ordering (i*kw + j)*IC + c.
        wm = (w * scale).transpose(2, 3, 1, 0).reshape(kh * kw * ic, oc)
        kd = wm.shape[0]
        kp, np_ = _pad_k(kd), _pad_n(oc)
        wp = jnp.zeros((kp, np_), jnp.float32).at[:kd, :oc].set(wm)
        bp = jnp.zeros((1, np_), jnp.float32).at[0, :oc].set(b)
        return wp.astype(jnp.bfloat16), bp

    p = {}
    # /255 input scaling folded into conv1's weights.
    p["c1_w"], p["c1_b"] = prep_conv(raw["conv1_w"], raw["conv1_b"],
                                     scale=1.0 / 255.0)
    p["c2_w"], p["c2_b"] = prep_conv(raw["conv2_w"], raw["conv2_b"])
    p["c3_w"], p["c3_b"] = prep_conv(raw["conv3_w"], raw["conv3_b"])

    # fc1: permute columns from PyTorch's NCHW flatten (c, h, w) to the NHWC
    # flatten (h, w, c) used here, transpose once to (K1, 512), cast to bf16.
    hid = raw["fc1_w"].shape[0]
    fc1 = raw["fc1_w"].reshape(hid, 64, h3, w3).transpose(0, 2, 3, 1)
    fc1 = fc1.reshape(hid, h3 * w3 * 64)
    p["fc1_w"] = fc1.T.astype(jnp.bfloat16)                      # (K1, 512)
    p["fc1_b"] = raw["fc1_b"].reshape(1, hid).astype(jnp.float32)

    a = raw["fc2_w"].shape[0]
    ap = _round_up(a, 128)
    p["fc2_w"] = (jnp.zeros((hid, ap), jnp.float32)
                  .at[:, :a].set(raw["fc2_w"].T).astype(jnp.bfloat16))
    p["fc2_b"] = jnp.zeros((1, ap), jnp.float32).at[0, :a].set(raw["fc2_b"])
    return p


# ----------------------------------------------------------------------------
# Forward pass
# ----------------------------------------------------------------------------
@functools.partial(jax.jit, static_argnums=(2,))
def dqn_forward(params, x, action_dim):
    """x: (N, C, H, W) uint8-like; returns (N, action_dim) f32 Q-values."""
    # Single layout conversion at the boundary; /255 is folded into conv1 w.
    x = jnp.transpose(x, (0, 2, 3, 1)).astype(jnp.bfloat16)       # NHWC
    x = conv2d_relu_nhwc(x, params["c1_w"], params["c1_b"],
                         out_channels=32, k=8, s=4)
    x = conv2d_relu_nhwc(x, params["c2_w"], params["c2_b"],
                         out_channels=64, k=4, s=2)
    x = conv2d_relu_nhwc(x, params["c3_w"], params["c3_b"],
                         out_channels=64, k=3, s=1)
    n = x.shape[0]
    flat = x.reshape(n, -1)           # (h, w, c) order; fc1_w permuted to match
    return fused_fc(flat, params["fc1_w"], params["fc1_b"],
                    params["fc2_w"], params["fc2_b"], action_dim)


# ----------------------------------------------------------------------------
# Pure-JAX reference (mirrors the kernel's bf16-operand / f32-accum precision)
# ----------------------------------------------------------------------------
def dqn_reference(raw, x, action_dim):
    def conv(x, w, b, s):
        y = jax.lax.conv_general_dilated(
            x.astype(jnp.bfloat16), w.astype(jnp.bfloat16),
            window_strides=(s, s), padding="VALID",
            dimension_numbers=("NCHW", "OIHW", "NCHW"),
            preferred_element_type=jnp.float32)
        return jnp.maximum(y + b.reshape(1, -1, 1, 1), 0.0)

    x = conv(x.astype(jnp.float32), raw["conv1_w"] * (1.0 / 255.0),
             raw["conv1_b"], 4)
    x = conv(x, raw["conv2_w"], raw["conv2_b"], 2)
    x = conv(x, raw["conv3_w"], raw["conv3_b"], 1)
    flat = x.reshape(x.shape[0], -1)
    h = jnp.maximum(
        jnp.dot(flat.astype(jnp.bfloat16), raw["fc1_w"].T.astype(jnp.bfloat16),
                preferred_element_type=jnp.float32) + raw["fc1_b"], 0.0)
    q = jnp.dot(h.astype(jnp.bfloat16), raw["fc2_w"].T.astype(jnp.bfloat16),
                preferred_element_type=jnp.float32) + raw["fc2_b"]
    return q


if __name__ == "__main__":
    # Small Atari-like config: obs_dim = (H, W, C) = (44, 44, 4), 6 actions.
    obs_dim = (44, 44, 4)
    action_dim = 6
    batch = 2

    key = jax.random.PRNGKey(0)
    pkey, xkey = jax.random.split(key)
    raw = init_params(pkey, obs_dim, action_dim)
    params = prepare_params(raw, obs_dim)          # one-time weight prep

    # Input in NCHW, uint8-like pixel values (as the PyTorch module expects).
    x = jax.random.randint(
        xkey, (batch, obs_dim[2], obs_dim[0], obs_dim[1]), 0, 256,
        dtype=jnp.int32).astype(jnp.uint8)

    q = dqn_forward(params, x, action_dim)
    jax.block_until_ready(q)
    assert q.shape == (batch, action_dim), q.shape

    # Correctness sanity check against a pure-JAX reference with matching
    # mixed precision (bf16 operands, f32 accumulation).
    q_ref = dqn_reference(raw, x, action_dim)
    err = float(jnp.max(jnp.abs(q - q_ref)))
    scale = float(jnp.max(jnp.abs(q_ref))) + 1e-6
    assert err / scale < 0.05, (err, scale)

    print("KERNEL_OK")
</pallas_src>

<mosaic_0001>
module attributes {stable_mosaic.version = 11 : i64} {
  func.func @_matmul_bias_act_kernel(%arg0: i32, %arg1: i32, %arg2: i32, %arg3: memref<200x256xbf16, #tpu.memory_space<vmem>>, %arg4: memref<256x128xbf16, #tpu.memory_space<vmem>>, %arg5: memref<1x128xf32, #tpu.memory_space<vmem>>, %arg6: memref<200x128xbf16, #tpu.memory_space<vmem>>, %arg7: memref<200x128xf32, #tpu.memory_space<vmem>>) attributes {dimension_semantics = [#tpu.dimension_semantics<parallel>, #tpu.dimension_semantics<parallel>, #tpu.dimension_semantics<arbitrary>], iteration_bounds = array<i64: 1, 1, 1>, scalar_prefetch = 0 : i64, scratch_operands = 1 : i64, tpu.core_type = #tpu.core_type<tc>, window_params = [{transform_indices = @transform_0, window_bounds = array<i64: 200, 256>}, {transform_indices = @transform_1, window_bounds = array<i64: 256, 128>}, {transform_indices = @transform_2, window_bounds = array<i64: 1, 128>}, {transform_indices = @transform_3, window_bounds = array<i64: 200, 128>}]} {
    %c0_i32 = arith.constant 0 : i32
    %0 = arith.cmpi eq, %arg2, %c0_i32 : i32
    %1 = arith.extui %0 : i1 to i32
    %c0_i32_0 = arith.constant 0 : i32
    %2 = arith.cmpi ne, %1, %c0_i32_0 : i32
    scf.if %2 {
      %cst_10 = arith.constant 0.000000e+00 : f32
      %12 = vector.broadcast %cst_10 : f32 to vector<200x128xf32>
      %c0_11 = arith.constant 0 : index
      %c0_12 = arith.constant 0 : index
      %13 = vector.load %arg7[%c0_11, %c0_12] : memref<200x128xf32, #tpu.memory_space<vmem>>, vector<200x128xf32>
      tpu.vector_store %arg7[%c0_11, %c0_12], %12 {strides = array<i32>} : memref<200x128xf32, #tpu.memory_space<vmem>>, vector<200x128xf32>,
    } else {
    }
    %c0 = arith.constant 0 : index
    %c0_1 = arith.constant 0 : index
    %3 = vector.load %arg7[%c0, %c0_1] : memref<200x128xf32, #tpu.memory_space<vmem>>, vector<200x128xf32>
    %c0_2 = arith.constant 0 : index
    %c0_3 = arith.constant 0 : index
    %4 = vector.load %arg3[%c0_2, %c0_3] : memref<200x256xbf16, #tpu.memory_space<vmem>>, vector<200x256xbf16>
    %c0_4 = arith.constant 0 : index
    %c0_5 = arith.constant 0 : index
    %5 = vector.load %arg4[%c0_4, %c0_5] : memref<256x128xbf16, #tpu.memory_space<vmem>>, vector<256x128xbf16>
    %cst = arith.constant dense<0.000000e+00> : vector<200x128xf32>
    %6 = tpu.matmul %4, %5, %cst {dimension_numbers = #tpu.dot_dimension_numbers<[1], [0], [0], [1], [0, 0, 1, 1], [], []>} : vector<200x256xbf16>, vector<256x128xbf16>, vector<200x128xf32> -> vector<200x128xf32>
    %7 = arith.addf %3, %6 : vector<200x128xf32>
    %c0_6 = arith.constant 0 : index
    %c0_7 = arith.constant 0 : index
    %8 = vector.load %arg7[%c0_6, %c0_7] : memref<200x128xf32, #tpu.memory_space<vmem>>, vector<200x128xf32>
    tpu.vector_store %arg7[%c0_6, %c0_7], %7 {strides = array<i32>} : memref<200x128xf32, #tpu.memory_space<vmem>>, vector<200x128xf32>,
    %c0_i32_8 = arith.constant 0 : i32
    %9 = arith.cmpi eq, %arg2, %c0_i32_8 : i32
    %10 = arith.extui %9 : i1 to i32
    %c0_i32_9 = arith.constant 0 : i32
    %11 = arith.cmpi ne, %10, %c0_i32_9 : i32
    scf.if %11 {
      %c0_10 = arith.constant 0 : index
      %c0_11 = arith.constant 0 : index
      %12 = vector.load %arg7[%c0_10, %c0_11] : memref<200x128xf32, #tpu.memory_space<vmem>>, vector<200x128xf32>
      %c0_12 = arith.constant 0 : index
      %c0_13 = arith.constant 0 : index
      %13 = vector.load %arg5[%c0_12, %c0_13] : memref<1x128xf32, #tpu.memory_space<vmem>>, vector<1x128xf32>
      %14 = vector.broadcast %13 : vector<1x128xf32> to vector<200x128xf32>
      %15 = arith.addf %12, %14 : vector<200x128xf32>
      %cst_14 = arith.constant 0.000000e+00 : f32
      %16 = vector.broadcast %cst_14 : f32 to vector<200x128xf32>
      %17 = arith.maximumf %15, %16 : vector<200x128xf32>
      %18 = arith.truncf %17 : vector<200x128xf32> to vector<200x128xbf16>
      %c0_15 = arith.constant 0 : index
      %c0_16 = arith.constant 0 : index
      %19 = vector.load %arg6[%c0_15, %c0_16] : memref<200x128xbf16, #tpu.memory_space<vmem>>, vector<200x128xbf16>
      tpu.vector_store %arg6[%c0_15, %c0_16], %18 {strides = array<i32>} : memref<200x128xbf16, #tpu.memory_space<vmem>>, vector<200x128xbf16>,
    } else {
    }
    return
  }
  func.func @transform_0(%arg0: i32, %arg1: i32, %arg2: i32) -> (i32, i32) {
    %c0_i32 = arith.constant 0 : i32
    return %arg0, %arg2 : i32, i32
  }
  func.func @transform_1(%arg0: i32, %arg1: i32, %arg2: i32) -> (i32, i32) {
    %c0_i32 = arith.constant 0 : i32
    return %arg2, %arg1 : i32, i32
  }
  func.func @transform_2(%arg0: i32, %arg1: i32, %arg2: i32) -> (i32, i32) {
    %c0_i32 = arith.constant 0 : i32
    %c0_i32_0 = arith.constant 0 : i32
    return %c0_i32, %arg1 : i32, i32
  }
  func.func @transform_3(%arg0: i32, %arg1: i32, %arg2: i32) -> (i32, i32) {
    %c0_i32 = arith.constant 0 : i32
    return %arg0, %arg1 : i32, i32
  }
}

module attributes {stable_mosaic.version = 11 : i64} {
  func.func @_matmul_bias_act_kernel(%arg0: i32, %arg1: i32, %arg2: i32, %arg3: memref<32x512xbf16, #tpu.memory_space<vmem>>, %arg4: memref<512x128xbf16, #tpu.memory_space<vmem>>, %arg5: memref<1x128xf32, #tpu.memory_space<vmem>>, %arg6: memref<32x128xbf16, #tpu.memory_space<vmem>>, %arg7: memref<32x128xf32, #tpu.memory_space<vmem>>) attributes {dimension_semantics = [#tpu.dimension_semantics<parallel>, #tpu.dimension_semantics<parallel>, #tpu.dimension_semantics<arbitrary>], iteration_bounds = array<i64: 1, 1, 1>, scalar_prefetch = 0 : i64, scratch_operands = 1 : i64, tpu.core_type = #tpu.core_type<tc>, window_params = [{transform_indices = @transform_0, window_bounds = array<i64: 32, 512>}, {transform_indices = @transform_1, window_bounds = array<i64: 512, 128>}, {transform_indices = @transform_2, window_bounds = array<i64: 1, 128>}, {transform_indices = @transform_3, window_bounds = array<i64: 32, 128>}]} {
    %c0_i32 = arith.constant 0 : i32
    %0 = arith.cmpi eq, %arg2, %c0_i32 : i32
    %1 = arith.extui %0 : i1 to i32
    %c0_i32_0 = arith.constant 0 : i32
    %2 = arith.cmpi ne, %1, %c0_i32_0 : i32
    scf.if %2 {
      %cst_10 = arith.constant 0.000000e+00 : f32
      %12 = vector.broadcast %cst_10 : f32 to vector<32x128xf32>
      %c0_11 = arith.constant 0 : index
      %c0_12 = arith.constant 0 : index
      %13 = vector.load %arg7[%c0_11, %c0_12] : memref<32x128xf32, #tpu.memory_space<vmem>>, vector<32x128xf32>
      tpu.vector_store %arg7[%c0_11, %c0_12], %12 {strides = array<i32>} : memref<32x128xf32, #tpu.memory_space<vmem>>, vector<32x128xf32>,
    } else {
    }
    %c0 = arith.constant 0 : index
    %c0_1 = arith.constant 0 : index
    %3 = vector.load %arg7[%c0, %c0_1] : memref<32x128xf32, #tpu.memory_space<vmem>>, vector<32x128xf32>
    %c0_2 = arith.constant 0 : index
    %c0_3 = arith.constant 0 : index
    %4 = vector.load %arg3[%c0_2, %c0_3] : memref<32x512xbf16, #tpu.memory_space<vmem>>, vector<32x512xbf16>
    %c0_4 = arith.constant 0 : index
    %c0_5 = arith.constant 0 : index
    %5 = vector.load %arg4[%c0_4, %c0_5] : memref<512x128xbf16, #tpu.memory_space<vmem>>, vector<512x128xbf16>
    %cst = arith.constant dense<0.000000e+00> : vector<32x128xf32>
    %6 = tpu.matmul %4, %5, %cst {dimension_numbers = #tpu.dot_dimension_numbers<[1], [0], [0], [1], [0, 0, 1, 1], [], []>} : vector<32x512xbf16>, vector<512x128xbf16>, vector<32x128xf32> -> vector<32x128xf32>
    %7 = arith.addf %3, %6 : vector<32x128xf32>
    %c0_6 = arith.constant 0 : index
    %c0_7 = arith.constant 0 : index
    %8 = vector.load %arg7[%c0_6, %c0_7] : memref<32x128xf32, #tpu.memory_space<vmem>>, vector<32x128xf32>
    tpu.vector_store %arg7[%c0_6, %c0_7], %7 {strides = array<i32>} : memref<32x128xf32, #tpu.memory_space<vmem>>, vector<32x128xf32>,
    %c0_i32_8 = arith.constant 0 : i32
    %9 = arith.cmpi eq, %arg2, %c0_i32_8 : i32
    %10 = arith.extui %9 : i1 to i32
    %c0_i32_9 = arith.constant 0 : i32
    %11 = arith.cmpi ne, %10, %c0_i32_9 : i32
    scf.if %11 {
      %c0_10 = arith.constant 0 : index
      %c0_11 = arith.constant 0 : index
      %12 = vector.load %arg7[%c0_10, %c0_11] : memref<32x128xf32, #tpu.memory_space<vmem>>, vector<32x128xf32>
      %c0_12 = arith.constant 0 : index
      %c0_13 = arith.constant 0 : index
      %13 = vector.load %arg5[%c0_12, %c0_13] : memref<1x128xf32, #tpu.memory_space<vmem>>, vector<1x128xf32>
      %14 = vector.broadcast %13 : vector<1x128xf32> to vector<32x128xf32>
      %15 = arith.addf %12, %14 : vector<32x128xf32>
      %cst_14 = arith.constant 0.000000e+00 : f32
      %16 = vector.broadcast %cst_14 : f32 to vector<32x128xf32>
      %17 = arith.maximumf %15, %16 : vector<32x128xf32>
      %18 = arith.truncf %17 : vector<32x128xf32> to vector<32x128xbf16>
      %c0_15 = arith.constant 0 : index
      %c0_16 = arith.constant 0 : index
      %19 = vector.load %arg6[%c0_15, %c0_16] : memref<32x128xbf16, #tpu.memory_space<vmem>>, vector<32x128xbf16>
      tpu.vector_store %arg6[%c0_15, %c0_16], %18 {strides = array<i32>} : memref<32x128xbf16, #tpu.memory_space<vmem>>, vector<32x128xbf16>,
    } else {
    }
    return
  }
  func.func @transform_0(%arg0: i32, %arg1: i32, %arg2: i32) -> (i32, i32) {
    %c0_i32 = arith.constant 0 : i32
    return %arg0, %arg2 : i32, i32
  }
  func.func @transform_1(%arg0: i32, %arg1: i32, %arg2: i32) -> (i32, i32) {
    %c0_i32 = arith.constant 0 : i32
    return %arg2, %arg1 : i32, i32
  }
  func.func @transform_2(%arg0: i32, %arg1: i32, %arg2: i32) -> (i32, i32) {
    %c0_i32 = arith.constant 0 : i32
    %c0_i32_0 = arith.constant 0 : i32
    return %c0_i32, %arg1 : i32, i32
  }
  func.func @transform_3(%arg0: i32, %arg1: i32, %arg2: i32) -> (i32, i32) {
    %c0_i32 = arith.constant 0 : i32
    return %arg0, %arg1 : i32, i32
  }
}

module attributes {stable_mosaic.version = 11 : i64} {
  func.func @_matmul_bias_act_kernel(%arg0: i32, %arg1: i32, %arg2: i32, %arg3: memref<8x576xbf16, #tpu.memory_space<vmem>>, %arg4: memref<576x128xbf16, #tpu.memory_space<vmem>>, %arg5: memref<1x128xf32, #tpu.memory_space<vmem>>, %arg6: memref<8x128xbf16, #tpu.memory_space<vmem>>, %arg7: memref<8x128xf32, #tpu.memory_space<vmem>>) attributes {dimension_semantics = [#tpu.dimension_semantics<parallel>, #tpu.dimension_semantics<parallel>, #tpu.dimension_semantics<arbitrary>], iteration_bounds = array<i64: 1, 1, 1>, scalar_prefetch = 0 : i64, scratch_operands = 1 : i64, tpu.core_type = #tpu.core_type<tc>, window_params = [{transform_indices = @transform_0, window_bounds = array<i64: 8, 576>}, {transform_indices = @transform_1, window_bounds = array<i64: 576, 128>}, {transform_indices = @transform_2, window_bounds = array<i64: 1, 128>}, {transform_indices = @transform_3, window_bounds = array<i64: 8, 128>}]} {
    %c0_i32 = arith.constant 0 : i32
    %0 = arith.cmpi eq, %arg2, %c0_i32 : i32
    %1 = arith.extui %0 : i1 to i32
    %c0_i32_0 = arith.constant 0 : i32
    %2 = arith.cmpi ne, %1, %c0_i32_0 : i32
    scf.if %2 {
      %cst_10 = arith.constant 0.000000e+00 : f32
      %12 = vector.broadcast %cst_10 : f32 to vector<8x128xf32>
      %c0_11 = arith.constant 0 : index
      %c0_12 = arith.constant 0 : index
      %13 = vector.load %arg7[%c0_11, %c0_12] : memref<8x128xf32, #tpu.memory_space<vmem>>, vector<8x128xf32>
      tpu.vector_store %arg7[%c0_11, %c0_12], %12 {strides = array<i32>} : memref<8x128xf32, #tpu.memory_space<vmem>>, vector<8x128xf32>,
    } else {
    }
    %c0 = arith.constant 0 : index
    %c0_1 = arith.constant 0 : index
    %3 = vector.load %arg7[%c0, %c0_1] : memref<8x128xf32, #tpu.memory_space<vmem>>, vector<8x128xf32>
    %c0_2 = arith.constant 0 : index
    %c0_3 = arith.constant 0 : index
    %4 = vector.load %arg3[%c0_2, %c0_3] : memref<8x576xbf16, #tpu.memory_space<vmem>>, vector<8x576xbf16>
    %c0_4 = arith.constant 0 : index
    %c0_5 = arith.constant 0 : index
    %5 = vector.load %arg4[%c0_4, %c0_5] : memref<576x128xbf16, #tpu.memory_space<vmem>>, vector<576x128xbf16>
    %cst = arith.constant dense<0.000000e+00> : vector<8x128xf32>
    %6 = tpu.matmul %4, %5, %cst {dimension_numbers = #tpu.dot_dimension_numbers<[1], [0], [0], [1], [0, 0, 1, 1], [], []>} : vector<8x576xbf16>, vector<576x128xbf16>, vector<8x128xf32> -> vector<8x128xf32>
    %7 = arith.addf %3, %6 : vector<8x128xf32>
    %c0_6 = arith.constant 0 : index
    %c0_7 = arith.constant 0 : index
    %8 = vector.load %arg7[%c0_6, %c0_7] : memref<8x128xf32, #tpu.memory_space<vmem>>, vector<8x128xf32>
    tpu.vector_store %arg7[%c0_6, %c0_7], %7 {strides = array<i32>} : memref<8x128xf32, #tpu.memory_space<vmem>>, vector<8x128xf32>,
    %c0_i32_8 = arith.constant 0 : i32
    %9 = arith.cmpi eq, %arg2, %c0_i32_8 : i32
    %10 = arith.extui %9 : i1 to i32
    %c0_i32_9 = arith.constant 0 : i32
    %11 = arith.cmpi ne, %10, %c0_i32_9 : i32
    scf.if %11 {
      %c0_10 = arith.constant 0 : index
      %c0_11 = arith.constant 0 : index
      %12 = vector.load %arg7[%c0_10, %c0_11] : memref<8x128xf32, #tpu.memory_space<vmem>>, vector<8x128xf32>
      %c0_12 = arith.constant 0 : index
      %c0_13 = arith.constant 0 : index
      %13 = vector.load %arg5[%c0_12, %c0_13] : memref<1x128xf32, #tpu.memory_space<vmem>>, vector<1x128xf32>
      %14 = vector.broadcast %13 : vector<1x128xf32> to vector<8x128xf32>
      %15 = arith.addf %12, %14 : vector<8x128xf32>
      %cst_14 = arith.constant 0.000000e+00 : f32
      %16 = vector.broadcast %cst_14 : f32 to vector<8x128xf32>
      %17 = arith.maximumf %15, %16 : vector<8x128xf32>
      %18 = arith.truncf %17 : vector<8x128xf32> to vector<8x128xbf16>
      %c0_15 = arith.constant 0 : index
      %c0_16 = arith.constant 0 : index
      %19 = vector.load %arg6[%c0_15, %c0_16] : memref<8x128xbf16, #tpu.memory_space<vmem>>, vector<8x128xbf16>
      tpu.vector_store %arg6[%c0_15, %c0_16], %18 {strides = array<i32>} : memref<8x128xbf16, #tpu.memory_space<vmem>>, vector<8x128xbf16>,
    } else {
    }
    return
  }
  func.func @transform_0(%arg0: i32, %arg1: i32, %arg2: i32) -> (i32, i32) {
    %c0_i32 = arith.constant 0 : i32
    return %arg0, %arg2 : i32, i32
  }
  func.func @transform_1(%arg0: i32, %arg1: i32, %arg2: i32) -> (i32, i32) {
    %c0_i32 = arith.constant 0 : i32
    return %arg2, %arg1 : i32, i32
  }
  func.func @transform_2(%arg0: i32, %arg1: i32, %arg2: i32) -> (i32, i32) {
    %c0_i32 = arith.constant 0 : i32
    %c0_i32_0 = arith.constant 0 : i32
    return %c0_i32, %arg1 : i32, i32
  }
  func.func @transform_3(%arg0: i32, %arg1: i32, %arg2: i32) -> (i32, i32) {
    %c0_i32 = arith.constant 0 : i32
    return %arg0, %arg1 : i32, i32
  }
}

module attributes {stable_mosaic.version = 11 : i64} {
  func.func @_fused_fc_kernel(%arg0: i32, %arg1: memref<2x256xbf16, #tpu.memory_space<vmem>>, %arg2: memref<256x512xbf16, #tpu.memory_space<vmem>>, %arg3: memref<1x512xf32, #tpu.memory_space<vmem>>, %arg4: memref<512x128xbf16, #tpu.memory_space<vmem>>, %arg5: memref<1x128xf32, #tpu.memory_space<vmem>>, %arg6: memref<2x128xf32, #tpu.memory_space<vmem>>) attributes {dimension_semantics = [#tpu.dimension_semantics<parallel>], iteration_bounds = array<i64: 1>, scalar_prefetch = 0 : i64, scratch_operands = 0 : i64, tpu.core_type = #tpu.core_type<tc>, window_params = [{transform_indices = @transform_0, window_bounds = array<i64: 2, 256>}, {pipeline_mode = #tpu.pipeline_mode<synchronous>, transform_indices = @transform_1, window_bounds = array<i64: 256, 512>}, {pipeline_mode = #tpu.pipeline_mode<synchronous>, transform_indices = @transform_2, window_bounds = array<i64: 1, 512>}, {pipeline_mode = #tpu.pipeline_mode<synchronous>, transform_indices = @transform_3, window_bounds = array<i64: 512, 128>}, {pipeline_mode = #tpu.pipeline_mode<synchronous>, transform_indices = @transform_4, window_bounds = array<i64: 1, 128>}, {transform_indices = @transform_5, window_bounds = array<i64: 2, 128>}]} {
    %c0 = arith.constant 0 : index
    %c0_0 = arith.constant 0 : index
    %0 = vector.load %arg1[%c0, %c0_0] : memref<2x256xbf16, #tpu.memory_space<vmem>>, vector<2x256xbf16>
    %c0_1 = arith.constant 0 : index
    %c0_2 = arith.constant 0 : index
    %1 = vector.load %arg2[%c0_1, %c0_2] : memref<256x512xbf16, #tpu.memory_space<vmem>>, vector<256x512xbf16>
    %cst = arith.constant dense<0.000000e+00> : vector<2x512xf32>
    %2 = tpu.matmul %0, %1, %cst {dimension_numbers = #tpu.dot_dimension_numbers<[1], [0], [0], [1], [0, 0, 1, 1], [], []>} : vector<2x256xbf16>, vector<256x512xbf16>, vector<2x512xf32> -> vector<2x512xf32>
    %c0_3 = arith.constant 0 : index
    %c0_4 = arith.constant 0 : index
    %3 = vector.load %arg3[%c0_3, %c0_4] : memref<1x512xf32, #tpu.memory_space<vmem>>, vector<1x512xf32>
    %4 = vector.broadcast %3 : vector<1x512xf32> to vector<2x512xf32>
    %5 = arith.addf %2, %4 : vector<2x512xf32>
    %cst_5 = arith.constant 0.000000e+00 : f32
    %6 = vector.broadcast %cst_5 : f32 to vector<2x512xf32>
    %7 = arith.maximumf %5, %6 : vector<2x512xf32>
    %8 = arith.truncf %7 : vector<2x512xf32> to vector<2x512xbf16>
    %c0_6 = arith.constant 0 : index
    %c0_7 = arith.constant 0 : index
    %9 = vector.load %arg4[%c0_6, %c0_7] : memref<512x128xbf16, #tpu.memory_space<vmem>>, vector<512x128xbf16>
    %cst_8 = arith.constant dense<0.000000e+00> : vector<2x128xf32>
    %10 = tpu.matmul %8, %9, %cst_8 {dimension_numbers = #tpu.dot_dimension_numbers<[1], [0], [0], [1], [0, 0, 1, 1], [], []>} : vector<2x512xbf16>, vector<512x128xbf16>, vector<2x128xf32> -> vector<2x128xf32>
    %c0_9 = arith.constant 0 : index
    %c0_10 = arith.constant 0 : index
    %11 = vector.load %arg5[%c0_9, %c0_10] : memref<1x128xf32, #tpu.memory_space<vmem>>, vector<1x128xf32>
    %12 = vector.broadcast %11 : vector<1x128xf32> to vector<2x128xf32>
    %13 = arith.addf %10, %12 : vector<2x128xf32>
    %c0_11 = arith.constant 0 : index
    %c0_12 = arith.constant 0 : index
    %14 = vector.load %arg6[%c0_11, %c0_12] : memref<2x128xf32, #tpu.memory_space<vmem>>, vector<2x128xf32>
    tpu.vector_store %arg6[%c0_11, %c0_12], %13 {strides = array<i32>} : memref<2x128xf32, #tpu.memory_space<vmem>>, vector<2x128xf32>,
    return
  }
  func.func @transform_0(%arg0: i32) -> (i32, i32) {
    %c0_i32 = arith.constant 0 : i32
    %c0_i32_0 = arith.constant 0 : i32
    return %arg0, %c0_i32 : i32, i32
  }
  func.func @transform_1(%arg0: i32) -> (i32, i32) {
    %c0_i32 = arith.constant 0 : i32
    %c0_i32_0 = arith.constant 0 : i32
    %c0_i32_1 = arith.constant 0 : i32
    return %c0_i32, %c0_i32_0 : i32, i32
  }
  func.func @transform_2(%arg0: i32) -> (i32, i32) {
    %c0_i32 = arith.constant 0 : i32
    %c0_i32_0 = arith.constant 0 : i32
    %c0_i32_1 = arith.constant 0 : i32
    return %c0_i32, %c0_i32_0 : i32, i32
  }
  func.func @transform_3(%arg0: i32) -> (i32, i32) {
    %c0_i32 = arith.constant 0 : i32
    %c0_i32_0 = arith.constant 0 : i32
    %c0_i32_1 = arith.constant 0 : i32
    return %c0_i32, %c0_i32_0 : i32, i32
  }
  func.func @transform_4(%arg0: i32) -> (i32, i32) {
    %c0_i32 = arith.constant 0 : i32
    %c0_i32_0 = arith.constant 0 : i32
    %c0_i32_1 = arith.constant 0 : i32
    return %c0_i32, %c0_i32_0 : i32, i32
  }
  func.func @transform_5(%arg0: i32) -> (i32, i32) {
    %c0_i32 = arith.constant 0 : i32
    %c0_i32_0 = arith.constant 0 : i32
    return %arg0, %c0_i32 : i32, i32
  }
}

</mosaic_0001>

<llo_original>
// kernel: dqn_forward.4
$region0: #{dqn_forward.4}
  #allocation0 [shape = 'u32[]', space=smem, size = 0x4, offset = 0x4, fixed_abs, tag = 'smem constant byte address 0x4 - core index']
  #allocation1 [shape = 'u32[144,128]{1,0:T(1,128)}', space=vmem, size = 0x12000, scoped, tag = 'internal scratch']
  #allocation2 [shape = 'f32[200,128]{1,0:T(8,128)}', space=vmem, size = 0x19000, scoped, tag = 'scratch operand']
  %s0 = inlined_call_operand.vmem [shape: bf16[200,256], index: 0, kind: input, shape index: {}]
  %s1 = inlined_call_operand.vmem [shape: bf16[256,128], index: 1, kind: input, shape index: {}]
  %s2 = inlined_call_operand.vmem [shape: f32[1,128], index: 2, kind: input, shape index: {}]
  %s3 = inlined_call_operand.vmem [shape: bf16[200,128], index: 3, kind: output, shape index: {}]
  %s4 = sld [smem:[#allocation0]]
  $region30: #{dqn_forward.4} parent=0
    _
  %s6 = ssub.s32 1, %s4
  %s7 = scalar_select 0, %s6, %s4
  // Predicated region
  $region2: #{dqn_forward.4} parent=0 // pred_check
    _
  $region3: #{dqn_forward.4} parent=0 // pred_check_branch
    %9 = sbr.rel (0) target = $region5
  $region4: #{dqn_forward.4} parent=0 // pred_region
    _
  $region5: #{dqn_forward.4} parent=0 // pred_fallthru
    _
  // Predicated region
  $region6: #{dqn_forward.4} parent=0 // pred_check
    _
  $region7: #{dqn_forward.4} parent=0 // pred_check_branch
    %11 = sbr.rel (0) target = $region9
  $region8: #{dqn_forward.4} parent=0 // pred_region
    _
  $region9: #{dqn_forward.4} parent=0 // pred_fallthru
    _
  // Predicated region
  $region10: #{dqn_forward.4} parent=0 // pred_check
    _
  $region11: #{dqn_forward.4} parent=0 // pred_check_branch
    %13 = sbr.rel (0) target = $region13
  $region12: #{dqn_forward.4} parent=0 // pred_region
    _
  $region13: #{dqn_forward.4} parent=0 // pred_fallthru
    _
  %p15 = scmp.eq.s32.totalorder 0, 0
  // Predicated region
  $region14: #{dqn_forward.4} parent=0 // pred_check
    %p16 = pneg %p15
  $region15: #{dqn_forward.4} parent=0 // pred_check_branch
    %18 = sbr.rel (%p16) target = $region17
  $region16: #{dqn_forward.4} parent=0 // pred_region
    %19 = vst [vmem:[#allocation2] sm:$0xff] 0.0
    %20 = vst [vmem:[#allocation2 + $0x8] sm:$0xff] 0.0
    %21 = vst [vmem:[#allocation2 + $0x10] sm:$0xff] 0.0
    %22 = vst [vmem:[#allocation2 + $0x18] sm:$0xff] 0.0
    %23 = vst [vmem:[#allocation2 + $0x20] sm:$0xff] 0.0
    %24 = vst [vmem:[#allocation2 + $0x28] sm:$0xff] 0.0
    %25 = vst [vmem:[#allocation2 + $0x30] sm:$0xff] 0.0
    %26 = vst [vmem:[#allocation2 + $0x38] sm:$0xff] 0.0
    %27 = vst [vmem:[#allocation2 + $0x40] sm:$0xff] 0.0
    %28 = vst [vmem:[#allocation2 + $0x48] sm:$0xff] 0.0
    %29 = vst [vmem:[#allocation2 + $0x50] sm:$0xff] 0.0
    %30 = vst [vmem:[#allocation2 + $0x58] sm:$0xff] 0.0
    %31 = vst [vmem:[#allocation2 + $0x60] sm:$0xff] 0.0
    %32 = vst [vmem:[#allocation2 + $0x68] sm:$0xff] 0.0
    %33 = vst [vmem:[#allocation2 + $0x70] sm:$0xff] 0.0
    %34 = vst [vmem:[#allocation2 + $0x78] sm:$0xff] 0.0
    %35 = vst [vmem:[#allocation2 + $0x80] sm:$0xff] 0.0
    %36 = vst [vmem:[#allocation2 + $0x88] sm:$0xff] 0.0
    %37 = vst [vmem:[#allocation2 + $0x90] sm:$0xff] 0.0
    %38 = vst [vmem:[#allocation2 + $0x98] sm:$0xff] 0.0
    %39 = vst [vmem:[#allocation2 + $0xa0] sm:$0xff] 0.0
    %40 = vst [vmem:[#allocation2 + $0xa8] sm:$0xff] 0.0
    %41 = vst [vmem:[#allocation2 + $0xb0] sm:$0xff] 0.0
    %42 = vst [vmem:[#allocation2 + $0xb8] sm:$0xff] 0.0
    %43 = vst [vmem:[#allocation2 + $0xc0] sm:$0xff] 0.0
  $region17: #{dqn_forward.4} parent=0 // pred_fallthru
    _
  %v44 = vld [vmem:[#allocation2] sm:$0xff]
  %v45 = vld [vmem:[#allocation2 + $0x8] sm:$0xff]
  %v46 = vld [vmem:[#allocation2 + $0x10] sm:$0xff]
  %v47 = vld [vmem:[#allocation2 + $0x18] sm:$0xff]
  %v48 = vld [vmem:[#allocation2 + $0x20] sm:$0xff]
  %v49 = vld [vmem:[#allocation2 + $0x28] sm:$0xff]
  %v50 = vld [vmem:[#allocation2 + $0x30] sm:$0xff]
  %v51 = vld [vmem:[#allocation2 + $0x38] sm:$0xff]
  %v52 = vld [vmem:[#allocation2 + $0x40] sm:$0xff]
  %v53 = vld [vmem:[#allocation2 + $0x48] sm:$0xff]
  %v54 = vld [vmem:[#allocation2 + $0x50] sm:$0xff]
  %v55 = vld [vmem:[#allocation2 + $0x58] sm:$0xff]
  %v56 = vld [vmem:[#allocation2 + $0x60] sm:$0xff]
  %v57 = vld [vmem:[#allocation2 + $0x68] sm:$0xff]
  %v58 = vld [vmem:[#allocation2 + $0x70] sm:$0xff]
  %v59 = vld [vmem:[#allocation2 + $0x78] sm:$0xff]
  %v60 = vld [vmem:[#allocation2 + $0x80] sm:$0xff]
  %v61 = vld [vmem:[#allocation2 + $0x88] sm:$0xff]
  %v62 = vld [vmem:[#allocation2 + $0x90] sm:$0xff]
  %v63 = vld [vmem:[#allocation2 + $0x98] sm:$0xff]
  %v64 = vld [vmem:[#allocation2 + $0xa0] sm:$0xff]
  %v65 = vld [vmem:[#allocation2 + $0xa8] sm:$0xff]
  %v66 = vld [vmem:[#allocation2 + $0xb0] sm:$0xff]
  %v67 = vld [vmem:[#allocation2 + $0xb8] sm:$0xff]
  %v68 = vld [vmem:[#allocation2 + $0xc0] sm:$0xff]
  %v69 = vld [vmem:[%s0] sm:$0xff]
  %v70 = vld [vmem:[%s0 + $0x8] sm:$0xff]
  %v71 = vld [vmem:[%s0 + $0x10] sm:$0xff]
  %v72 = vld [vmem:[%s0 + $0x18] sm:$0xff]
  %v73 = vld [vmem:[%s0 + $0x20] sm:$0xff]
  %v74 = vld [vmem:[%s0 + $0x28] sm:$0xff]
  %v75 = vld [vmem:[%s0 + $0x30] sm:$0xff]
  %v76 = vld [vmem:[%s0 + $0x38] sm:$0xff]
  %v77 = vld [vmem:[%s0 + $0x40] sm:$0xff]
  %v78 = vld [vmem:[%s0 + $0x48] sm:$0xff]
  %v79 = vld [vmem:[%s0 + $0x50] sm:$0xff]
  %v80 = vld [vmem:[%s0 + $0x58] sm:$0xff]
  %v81 = vld [vmem:[%s0 + $0x60] sm:$0xff]
  %v82 = vld [vmem:[%s0 + $0x68] sm:$0xff]
  %v83 = vld [vmem:[%s0 + $0x70] sm:$0xff]
  %v84 = vld [vmem:[%s0 + $0x78] sm:$0xff]
  %v85 = vld [vmem:[%s0 + $0x80] sm:$0xff]
  %v86 = vld [vmem:[%s0 + $0x88] sm:$0xff]
  %v87 = vld [vmem:[%s0 + $0x90] sm:$0xff]
  %v88 = vld [vmem:[%s0 + $0x98] sm:$0xff]
  %v89 = vld [vmem:[%s0 + $0xa0] sm:$0xff]
  %v90 = vld [vmem:[%s0 + $0xa8] sm:$0xff]
  %v91 = vld [vmem:[%s0 + $0xb0] sm:$0xff]
  %v92 = vld [vmem:[%s0 + $0xb8] sm:$0xff]
  %v93 = vld [vmem:[%s0 + $0xc0] sm:$0xff]
  %v94 = vld [vmem:[%s1] sm:$0xf]
  %v95 = vld [vmem:[%s1 + $0x4] sm:$0xf]
  %v96 = vld [vmem:[%s1 + $0x8] sm:$0xf]
  %v97 = vld [vmem:[%s1 + $0xc] sm:$0xf]
  %v98 = vld [vmem:[%s1 + $0x10] sm:$0xf]
  %v99 = vld [vmem:[%s1 + $0x14] sm:$0xf]
  %v100 = vld [vmem:[%s1 + $0x18] sm:$0xf]
  %v101 = vld [vmem:[%s1 + $0x1c] sm:$0xf]
  %v102 = vld [vmem:[%s1 + $0x20] sm:$0xf]
  %v103 = vld [vmem:[%s1 + $0x24] sm:$0xf]
  %v104 = vld [vmem:[%s1 + $0x28] sm:$0xf]
  %v105 = vld [vmem:[%s1 + $0x2c] sm:$0xf]
  %v106 = vld [vmem:[%s1 + $0x30] sm:$0xf]
  %v107 = vld [vmem:[%s1 + $0x34] sm:$0xf]
  %v108 = vld [vmem:[%s1 + $0x38] sm:$0xf]
  %v109 = vld [vmem:[%s1 + $0x3c] sm:$0xf]
  %v110 = vld [vmem:[%s1 + $0x40] sm:$0xf]
  %v111 = vld [vmem:[%s1 + $0x44] sm:$0xf]
  %v112 = vld [vmem:[%s1 + $0x48] sm:$0xf]
  %v113 = vld [vmem:[%s1 + $0x4c] sm:$0xf]
  %v114 = vld [vmem:[%s1 + $0x50] sm:$0xf]
  %v115 = vld [vmem:[%s1 + $0x54] sm:$0xf]
  %v116 = vld [vmem:[%s1 + $0x58] sm:$0xf]
  %v117 = vld [vmem:[%s1 + $0x5c] sm:$0xf]
  %v118 = vld [vmem:[%s1 + $0x60] sm:$0xf]
  %v119 = vld [vmem:[%s1 + $0x64] sm:$0xf]
  %v120 = vld [vmem:[%s1 + $0x68] sm:$0xf]
  %v121 = vld [vmem:[%s1 + $0x6c] sm:$0xf]
  %v122 = vld [vmem:[%s1 + $0x70] sm:$0xf]
  %v123 = vld [vmem:[%s1 + $0x74] sm:$0xf]
  %v124 = vld [vmem:[%s1 + $0x78] sm:$0xf]
  %v125 = vld [vmem:[%s1 + $0x7c] sm:$0xf]
  %v151 = vunpack.c.l.b16 %v69
  %v152 = vunpack.c.h.b16 %v69
  %v153 = vunpack.c.l.b16 %v70
  %v154 = vunpack.c.h.b16 %v70
  %v155 = vunpack.c.l.b16 %v71
  %v156 = vunpack.c.h.b16 %v71
  %v157 = vunpack.c.l.b16 %v72
  %v158 = vunpack.c.h.b16 %v72
  %v159 = vunpack.c.l.b16 %v73
  %v160 = vunpack.c.h.b16 %v73
  %v161 = vunpack.c.l.b16 %v74
  %v162 = vunpack.c.h.b16 %v74
  %v163 = vunpack.c.l.b16 %v75
  %v164 = vunpack.c.h.b16 %v75
  %v165 = vunpack.c.l.b16 %v76
  %v166 = vunpack.c.h.b16 %v76
  %v167 = vunpack.c.l.b16 %v77
  %v168 = vunpack.c.h.b16 %v77
  %v169 = vunpack.c.l.b16 %v78
  %v170 = vunpack.c.h.b16 %v78
  %v171 = vunpack.c.l.b16 %v79
  %v172 = vunpack.c.h.b16 %v79
  %v173 = vunpack.c.l.b16 %v80
  %v174 = vunpack.c.h.b16 %v80
  %v175 = vunpack.c.l.b16 %v81
  %v176 = vunpack.c.h.b16 %v81
  %v177 = vunpack.c.l.b16 %v82
  %v178 = vunpack.c.h.b16 %v82
  %v179 = vunpack.c.l.b16 %v83
  %v180 = vunpack.c.h.b16 %v83
  %v181 = vunpack.c.l.b16 %v84
  %v182 = vunpack.c.h.b16 %v84
  %v183 = vunpack.c.l.b16 %v85
  %v184 = vunpack.c.h.b16 %v85
  %v185 = vunpack.c.l.b16 %v86
  %v186 = vunpack.c.h.b16 %v86
  %v187 = vunpack.c.l.b16 %v87
  %v188 = vunpack.c.h.b16 %v87
  %v189 = vunpack.c.l.b16 %v88
  %v190 = vunpack.c.h.b16 %v88
  %v191 = vunpack.c.l.b16 %v89
  %v192 = vunpack.c.h.b16 %v89
  %v193 = vunpack.c.l.b16 %v90
  %v194 = vunpack.c.h.b16 %v90
  %v195 = vunpack.c.l.b16 %v91
  %v196 = vunpack.c.h.b16 %v91
  %v197 = vunpack.c.l.b16 %v92
  %v198 = vunpack.c.h.b16 %v92
  %v199 = vunpack.c.l.b16 %v93
  %v200 = vunpack.c.h.b16 %v93
  %v201 = vpack.c.b16 %v153, %v151
  %v202 = vpack.c.b16 %v154, %v152
  %v203 = vpack.c.b16 %v157, %v155
  %v204 = vpack.c.b16 %v158, %v156
  %v205 = vpack.c.b16 %v161, %v159
  %v206 = vpack.c.b16 %v162, %v160
  %v207 = vpack.c.b16 %v165, %v163
  %v208 = vpack.c.b16 %v166, %v164
  %v209 = vpack.c.b16 %v169, %v167
  %v210 = vpack.c.b16 %v170, %v168
  %v211 = vpack.c.b16 %v173, %v171
  %v212 = vpack.c.b16 %v174, %v172
  %v213 = vpack.c.b16 %v177, %v175
  %v214 = vpack.c.b16 %v178, %v176
  %v215 = vpack.c.b16 %v181, %v179
  %v216 = vpack.c.b16 %v182, %v180
  %v217 = vpack.c.b16 %v185, %v183
  %v218 = vpack.c.b16 %v186, %v184
  %v219 = vpack.c.b16 %v189, %v187
  %v220 = vpack.c.b16 %v190, %v188
  %v221 = vpack.c.b16 %v193, %v191
  %v222 = vpack.c.b16 %v194, %v192
  %v223 = vpack.c.b16 %v197, %v195
  %v224 = vpack.c.b16 %v198, %v196
  %v225 = vpack.c.b16 %v199, %v199
  %v226 = vpack.c.b16 %v200, %v200
  %v285 = vunpack.c.l.b16 %v94
  %v286 = vunpack.c.l.b16 %v95
  %v287 = vunpack.c.l.b16 %v96
  %v288 = vunpack.c.l.b16 %v97
  %v289 = vunpack.c.l.b16 %v98
  %v290 = vunpack.c.l.b16 %v99
  %v291 = vunpack.c.l.b16 %v100
  %v292 = vunpack.c.l.b16 %v101
  %v293 = vunpack.c.l.b16 %v102
  %v294 = vunpack.c.l.b16 %v103
  %v295 = vunpack.c.l.b16 %v104
  %v296 = vunpack.c.l.b16 %v105
  %v297 = vunpack.c.l.b16 %v106
  %v298 = vunpack.c.l.b16 %v107
  %v299 = vunpack.c.l.b16 %v108
  %v300 = vunpack.c.l.b16 %v109
  %v301 = vunpack.c.l.b16 %v110
  %v302 = vunpack.c.l.b16 %v111
  %v303 = vunpack.c.l.b16 %v112
  %v304 = vunpack.c.l.b16 %v113
  %v305 = vunpack.c.l.b16 %v114
  %v306 = vunpack.c.l.b16 %v115
  %v307 = vunpack.c.l.b16 %v116
  %v308 = vunpack.c.l.b16 %v117
  %v309 = vunpack.c.l.b16 %v118
  %v310 = vunpack.c.l.b16 %v119
  %v311 = vunpack.c.l.b16 %v120
  %v312 = vunpack.c.l.b16 %v121
  %v313 = vunpack.c.l.b16 %v122
  %v314 = vunpack.c.l.b16 %v123
  %v315 = vunpack.c.l.b16 %v124
  %v316 = vunpack.c.l.b16 %v125
  %v317 = vpack.c.b16 %v286, %v285
  %v318 = vpack.c.b16 %v288, %v287
  %v319 = vpack.c.b16 %v290, %v289
  %v320 = vpack.c.b16 %v292, %v291
  %v321 = vpack.c.b16 %v294, %v293
  %v322 = vpack.c.b16 %v296, %v295
  %v323 = vpack.c.b16 %v298, %v297
  %v324 = vpack.c.b16 %v300, %v299
  %v325 = vpack.c.b16 %v302, %v301
  %v326 = vpack.c.b16 %v304, %v303
  %v327 = vpack.c.b16 %v306, %v305
  %v328 = vpack.c.b16 %v308, %v307
  %v329 = vpack.c.b16 %v310, %v309
  %v330 = vpack.c.b16 %v312, %v311
  %v331 = vpack.c.b16 %v314, %v313
  %v332 = vpack.c.b16 %v316, %v315
  %349 = vmatprep.subr.bf16.mxu0 0
  %350 = vmatpush1.bf16.msra.mxu0 %v317
  %351 = vmatprep.subr.bf16.mxu0 0
  %352 = vmatpush1.bf16.msra.mxu0 %v318
  %353 = vmatprep.subr.bf16.mxu0 0
  %354 = vmatpush1.bf16.msra.mxu0 %v319
  %355 = vmatprep.subr.bf16.mxu0 0
  %356 = vmatpush1.bf16.msra.mxu0 %v320
  %357 = vmatprep.subr.bf16.mxu0 0
  %358 = vmatpush1.bf16.msra.mxu0 %v321
  %359 = vmatprep.subr.bf16.mxu0 0
  %360 = vmatpush1.bf16.msra.mxu0 %v322
  %361 = vmatprep.subr.bf16.mxu0 0
  %362 = vmatpush1.bf16.msra.mxu0 %v323
  %363 = vmatprep.subr.bf16.mxu0 0
  %364 = vmatpush1.bf16.msra.mxu0 %v324
  %365 = vmatprep.subr.bf16.mxu0 0
  %366 = vmatpush1.bf16.msra.mxu0 %v325
  %367 = vmatprep.subr.bf16.mxu0 0
  %368 = vmatpush1.bf16.msra.mxu0 %v326
  %369 = vmatprep.subr.bf16.mxu0 0
  %370 = vmatpush1.bf16.msra.mxu0 %v327
  %371 = vmatprep.subr.bf16.mxu0 0
  %372 = vmatpush1.bf16.msra.mxu0 %v328
  %373 = vmatprep.subr.bf16.mxu0 0
  %374 = vmatpush1.bf16.msra.mxu0 %v329
  %375 = vmatprep.subr.bf16.mxu0 0
  %376 = vmatpush1.bf16.msra.mxu0 %v330
  %377 = vmatprep.subr.bf16.mxu0 0
  %378 = vmatpush1.bf16.msra.mxu0 %v331
  %379 = vmatprep.subr.bf16.mxu0 0
  %380 = vmatpush1.bf16.msra.mxu0 %v332
  %381 = vmatprep.mubr.bf16.mxu0 %v202
  %382 = vmatmul.mubr.bf16.gmra.mrb[0].mxu0 %v201
  %v383 = vpop.f32.mrb[0].mxu0
  %v384 = vadd.f32 0.0, %v383
  %v385 = vpop.f32.mrb[0].mxu0
  %v386 = vpop.f32.mrb[0].mxu0
  %v387 = vadd.f32 0.0, %v386
  %v388 = vpop.f32.mrb[0].mxu0
  %389 = vmatprep.mubr.bf16.mxu0 %v204
  %390 = vmatmul.mubr.bf16.gmra.mrb[0].mxu0 %v203
  %v391 = vpop.f32.mrb[0].mxu0
  %v392 = vadd.f32 0.0, %v391
  %v393 = vpop.f32.mrb[0].mxu0
  %v394 = vpop.f32.mrb[0].mxu0
  %v395 = vadd.f32 0.0, %v394
  %v396 = vpop.f32.mrb[0].mxu0
  %397 = vmatprep.mubr.bf16.mxu0 %v206
  %398 = vmatmul.mubr.bf16.gmra.mrb[0].mxu0 %v205
  %v399 = vpop.f32.mrb[0].mxu0
  %v400 = vadd.f32 0.0, %v399
  %v401 = vpop.f32.mrb[0].mxu0
  %v402 = vpop.f32.mrb[0].mxu0
  %v403 = vadd.f32 0.0, %v402
  %v404 = vpop.f32.mrb[0].mxu0
  %405 = vmatprep.mubr.bf16.mxu0 %v208
  %406 = vmatmul.mubr.bf16.gmra.mrb[0].mxu0 %v207
  %v407 = vpop.f32.mrb[0].mxu0
  %v408 = vadd.f32 0.0, %v407
  %v409 = vpop.f32.mrb[0].mxu0
  %v410 = vpop.f32.mrb[0].mxu0
  %v411 = vadd.f32 0.0, %v410
  %v412 = vpop.f32.mrb[0].mxu0
  %413 = vmatprep.mubr.bf16.mxu0 %v210
  %414 = vmatmul.mubr.bf16.gmra.mrb[0].mxu0 %v209
  %v415 = vpop.f32.mrb[0].mxu0
  %v416 = vadd.f32 0.0, %v415
  %v417 = vpop.f32.mrb[0].mxu0
  %v418 = vpop.f32.mrb[0].mxu0
  %v419 = vadd.f32 0.0, %v418
  %v420 = vpop.f32.mrb[0].mxu0
  %421 = vmatprep.mubr.bf16.mxu0 %v212
  %422 = vmatmul.mubr.bf16.gmra.mrb[0].mxu0 %v211
  %v423 = vpop.f32.mrb[0].mxu0
  %v424 = vadd.f32 0.0, %v423
  %v425 = vpop.f32.mrb[0].mxu0
  %v426 = vpop.f32.mrb[0].mxu0
  %v427 = vadd.f32 0.0, %v426
  %v428 = vpop.f32.mrb[0].mxu0
  %429 = vmatprep.mubr.bf16.mxu0 %v214
  %430 = vmatmul.mubr.bf16.gmra.mrb[0].mxu0 %v213
  %v431 = vpop.f32.mrb[0].mxu0
  %v432 = vadd.f32 0.0, %v431
  %v433 = vpop.f32.mrb[0].mxu0
  %v434 = vpop.f32.mrb[0].mxu0
  %v435 = vadd.f32 0.0, %v434
  %v436 = vpop.f32.mrb[0].mxu0
  %437 = vmatprep.mubr.bf16.mxu0 %v216
  %438 = vmatmul.mubr.bf16.gmra.mrb[0].mxu0 %v215
  %v439 = vpop.f32.mrb[0].mxu0
  %v440 = vadd.f32 0.0, %v439
  %v441 = vpop.f32.mrb[0].mxu0
  %v442 = vpop.f32.mrb[0].mxu0
  %v443 = vadd.f32 0.0, %v442
  %v444 = vpop.f32.mrb[0].mxu0
  %445 = vmatprep.mubr.bf16.mxu0 %v218
  %446 = vmatmul.mubr.bf16.gmra.mrb[0].mxu0 %v217
  %v447 = vpop.f32.mrb[0].mxu0
  %v448 = vadd.f32 0.0, %v447
  %v449 = vpop.f32.mrb[0].mxu0
  %v450 = vpop.f32.mrb[0].mxu0
  %v451 = vadd.f32 0.0, %v450
  %v452 = vpop.f32.mrb[0].mxu0
  %453 = vmatprep.mubr.bf16.mxu0 %v220
  %454 = vmatmul.mubr.bf16.gmra.mrb[0].mxu0 %v219
  %v455 = vpop.f32.mrb[0].mxu0
  %v456 = vadd.f32 0.0, %v455
  %v457 = vpop.f32.mrb[0].mxu0
  %v458 = vpop.f32.mrb[0].mxu0
  %v459 = vadd.f32 0.0, %v458
  %v460 = vpop.f32.mrb[0].mxu0
  %461 = vmatprep.mubr.bf16.mxu0 %v222
  %462 = vmatmul.mubr.bf16.gmra.mrb[0].mxu0 %v221
  %v463 = vpop.f32.mrb[0].mxu0
  %v464 = vadd.f32 0.0, %v463
  %v465 = vpop.f32.mrb[0].mxu0
  %v466 = vpop.f32.mrb[0].mxu0
  %v467 = vadd.f32 0.0, %v466
  %v468 = vpop.f32.mrb[0].mxu0
  %469 = vmatprep.mubr.bf16.mxu0 %v224
  %470 = vmatmul.mubr.bf16.gmra.mrb[0].mxu0 %v223
  %v471 = vpop.f32.mrb[0].mxu0
  %v472 = vadd.f32 0.0, %v471
  %v473 = vpop.f32.mrb[0].mxu0
  %v474 = vpop.f32.mrb[0].mxu0
  %v475 = vadd.f32 0.0, %v474
  %v476 = vpop.f32.mrb[0].mxu0
  %477 = vmatprep.mubr.bf16.mxu0 %v226
  %478 = vmatmul.mubr.bf16.gmra.mrb[0].mxu0 %v225
  %v479 = vpop.f32.mrb[0].mxu0
  %v480 = vadd.f32 0.0, %v479
  %v481 = vpop.f32.mrb[0].mxu0
  %v482 = vpop.f32.mrb[0].mxu0
  %v483 = vpop.f32.mrb[0].mxu0
  %484 = vdwg.mxu0
  %v485 = vadd.f32 %v44, %v384
  %v486 = vadd.f32 %v45, %v387
  %v487 = vadd.f32 %v46, %v392
  %v488 = vadd.f32 %v47, %v395
  %v489 = vadd.f32 %v48, %v400
  %v490 = vadd.f32 %v49, %v403
  %v491 = vadd.f32 %v50, %v408
  %v492 = vadd.f32 %v51, %v411
  %v493 = vadd.f32 %v52, %v416
  %v494 = vadd.f32 %v53, %v419
  %v495 = vadd.f32 %v54, %v424
  %v496 = vadd.f32 %v55, %v427
  %v497 = vadd.f32 %v56, %v432
  %v498 = vadd.f32 %v57, %v435
  %v499 = vadd.f32 %v58, %v440
  %v500 = vadd.f32 %v59, %v443
  %v501 = vadd.f32 %v60, %v448
  %v502 = vadd.f32 %v61, %v451
  %v503 = vadd.f32 %v62, %v456
  %v504 = vadd.f32 %v63, %v459
  %v505 = vadd.f32 %v64, %v464
  %v506 = vadd.f32 %v65, %v467
  %v507 = vadd.f32 %v66, %v472
  %v508 = vadd.f32 %v67, %v475
  %v509 = vadd.f32 %v68, %v480
  %510 = vst [vmem:[#allocation2] sm:$0xff] %v485
  %511 = vst [vmem:[#allocation2 + $0x8] sm:$0xff] %v486
  %512 = vst [vmem:[#allocation2 + $0x10] sm:$0xff] %v487
  %513 = vst [vmem:[#allocation2 + $0x18] sm:$0xff] %v488
  %514 = vst [vmem:[#allocation2 + $0x20] sm:$0xff] %v489
  %515 = vst [vmem:[#allocation2 + $0x28] sm:$0xff] %v490
  %516 = vst [vmem:[#allocation2 + $0x30] sm:$0xff] %v491
  %517 = vst [vmem:[#allocation2 + $0x38] sm:$0xff] %v492
  %518 = vst [vmem:[#allocation2 + $0x40] sm:$0xff] %v493
  %519 = vst [vmem:[#allocation2 + $0x48] sm:$0xff] %v494
  %520 = vst [vmem:[#allocation2 + $0x50] sm:$0xff] %v495
  %521 = vst [vmem:[#allocation2 + $0x58] sm:$0xff] %v496
  %522 = vst [vmem:[#allocation2 + $0x60] sm:$0xff] %v497
  %523 = vst [vmem:[#allocation2 + $0x68] sm:$0xff] %v498
  %524 = vst [vmem:[#allocation2 + $0x70] sm:$0xff] %v499
  %525 = vst [vmem:[#allocation2 + $0x78] sm:$0xff] %v500
  %526 = vst [vmem:[#allocation2 + $0x80] sm:$0xff] %v501
  %527 = vst [vmem:[#allocation2 + $0x88] sm:$0xff] %v502
  %528 = vst [vmem:[#allocation2 + $0x90] sm:$0xff] %v503
  %529 = vst [vmem:[#allocation2 + $0x98] sm:$0xff] %v504
  %530 = vst [vmem:[#allocation2 + $0xa0] sm:$0xff] %v505
  %531 = vst [vmem:[#allocation2 + $0xa8] sm:$0xff] %v506
  %532 = vst [vmem:[#allocation2 + $0xb0] sm:$0xff] %v507
  %533 = vst [vmem:[#allocation2 + $0xb8] sm:$0xff] %v508
  %534 = vst [vmem:[#allocation2 + $0xc0] sm:$0xff] %v509
  // Predicated region
  $region18: #{dqn_forward.4} parent=0 // pred_check
    %p535 = pneg %p15
  $region19: #{dqn_forward.4} parent=0 // pred_check_branch
    %537 = sbr.rel (%p535) target = $region21
  $region20: #{dqn_forward.4} parent=0 // pred_region
    %v538 = vld [vmem:[#allocation2] sm:$0xff]
    %v539 = vld [vmem:[#allocation2 + $0x8] sm:$0xff]
    %v540 = vld [vmem:[#allocation2 + $0x10] sm:$0xff]
    %v541 = vld [vmem:[#allocation2 + $0x18] sm:$0xff]
    %v542 = vld [vmem:[#allocation2 + $0x20] sm:$0xff]
    %v543 = vld [vmem:[#allocation2 + $0x28] sm:$0xff]
    %v544 = vld [vmem:[#allocation2 + $0x30] sm:$0xff]
    %v545 = vld [vmem:[#allocation2 + $0x38] sm:$0xff]
    %v546 = vld [vmem:[#allocation2 + $0x40] sm:$0xff]
    %v547 = vld [vmem:[#allocation2 + $0x48] sm:$0xff]
    %v548 = vld [vmem:[#allocation2 + $0x50] sm:$0xff]
    %v549 = vld [vmem:[#allocation2 + $0x58] sm:$0xff]
    %v550 = vld [vmem:[#allocation2 + $0x60] sm:$0xff]
    %v551 = vld [vmem:[#allocation2 + $0x68] sm:$0xff]
    %v552 = vld [vmem:[#allocation2 + $0x70] sm:$0xff]
    %v553 = vld [vmem:[#allocation2 + $0x78] sm:$0xff]
    %v554 = vld [vmem:[#allocation2 + $0x80] sm:$0xff]
    %v555 = vld [vmem:[#allocation2 + $0x88] sm:$0xff]
    %v556 = vld [vmem:[#allocation2 + $0x90] sm:$0xff]
    %v557 = vld [vmem:[#allocation2 + $0x98] sm:$0xff]
    %v558 = vld [vmem:[#allocation2 + $0xa0] sm:$0xff]
    %v559 = vld [vmem:[#allocation2 + $0xa8] sm:$0xff]
    %v560 = vld [vmem:[#allocation2 + $0xb0] sm:$0xff]
    %v561 = vld [vmem:[#allocation2 + $0xb8] sm:$0xff]
    %v562 = vld [vmem:[#allocation2 + $0xc0] sm:$0xff]
    %v563 = vld [vmem:[%s2] sm:$0x1]
    %v565 = vlaneseq
    %v566 = vshrl.u32 %v565, 7
    %v567 = vsub.s32 0, %v566
    %v568 = vrot.slane %v563, %v567
    %v570 = vadd.f32 %v538, %v568
    %v571 = vadd.f32 %v539, %v568
    %v572 = vadd.f32 %v540, %v568
    %v573 = vadd.f32 %v541, %v568
    %v574 = vadd.f32 %v542, %v568
    %v575 = vadd.f32 %v543, %v568
    %v576 = vadd.f32 %v544, %v568
    %v577 = vadd.f32 %v545, %v568
    %v578 = vadd.f32 %v546, %v568
    %v579 = vadd.f32 %v547, %v568
    %v580 = vadd.f32 %v548, %v568
    %v581 = vadd.f32 %v549, %v568
    %v582 = vadd.f32 %v550, %v568
    %v583 = vadd.f32 %v551, %v568
    %v584 = vadd.f32 %v552, %v568
    %v585 = vadd.f32 %v553, %v568
    %v586 = vadd.f32 %v554, %v568
    %v587 = vadd.f32 %v555, %v568
    %v588 = vadd.f32 %v556, %v568
    %v589 = vadd.f32 %v557, %v568
    %v590 = vadd.f32 %v558, %v568
    %v591 = vadd.f32 %v559, %v568
    %v592 = vadd.f32 %v560, %v568
    %v593 = vadd.f32 %v561, %v568
    %v594 = vadd.f32 %v562, %v568
    %v595 = vmax.f32 %v570, 0.0
    %v596 = vmax.f32 %v571, 0.0
    %v597 = vmax.f32 %v572, 0.0
    %v598 = vmax.f32 %v573, 0.0
    %v599 = vmax.f32 %v574, 0.0
    %v600 = vmax.f32 %v575, 0.0
    %v601 = vmax.f32 %v576, 0.0
    %v602 = vmax.f32 %v577, 0.0
    %v603 = vmax.f32 %v578, 0.0
    %v604 = vmax.f32 %v579, 0.0
    %v605 = vmax.f32 %v580, 0.0
    %v606 = vmax.f32 %v581, 0.0
    %v607 = vmax.f32 %v582, 0.0
    %v608 = vmax.f32 %v583, 0.0
    %v609 = vmax.f32 %v584, 0.0
    %v610 = vmax.f32 %v585, 0.0
    %v611 = vmax.f32 %v586, 0.0
    %v612 = vmax.f32 %v587, 0.0
    %v613 = vmax.f32 %v588, 0.0
    %v614 = vmax.f32 %v589, 0.0
    %v615 = vmax.f32 %v590, 0.0
    %v616 = vmax.f32 %v591, 0.0
    %v617 = vmax.f32 %v592, 0.0
    %v618 = vmax.f32 %v593, 0.0
    %v619 = vmax.f32 %v594, 0.0
    %v620 = vpack.c.bf16 %v596, %v595
    %v621 = vpack.c.bf16 %v598, %v597
    %v622 = vpack.c.bf16 %v600, %v599
    %v623 = vpack.c.bf16 %v602, %v601
    %v624 = vpack.c.bf16 %v604, %v603
    %v625 = vpack.c.bf16 %v606, %v605
    %v626 = vpack.c.bf16 %v608, %v607
    %v627 = vpack.c.bf16 %v610, %v609
    %v628 = vpack.c.bf16 %v612, %v611
    %v629 = vpack.c.bf16 %v614, %v613
    %v630 = vpack.c.bf16 %v616, %v615
    %v631 = vpack.c.bf16 %v618, %v617
    %v632 = vpack.c.bf16 %v619, %v619
    %v646 = vunpack.c.l.b16 %v620
    %v647 = vunpack.c.h.b16 %v620
    %v648 = vunpack.c.l.b16 %v621
    %v649 = vunpack.c.h.b16 %v621
    %v650 = vunpack.c.l.b16 %v622
    %v651 = vunpack.c.h.b16 %v622
    %v652 = vunpack.c.l.b16 %v623
    %v653 = vunpack.c.h.b16 %v623
    %v654 = vunpack.c.l.b16 %v624
    %v655 = vunpack.c.h.b16 %v624
    %v656 = vunpack.c.l.b16 %v625
    %v657 = vunpack.c.h.b16 %v625
    %v658 = vunpack.c.l.b16 %v626
    %v659 = vunpack.c.h.b16 %v626
    %v660 = vunpack.c.l.b16 %v627
    %v661 = vunpack.c.h.b16 %v627
    %v662 = vunpack.c.l.b16 %v628
    %v663 = vunpack.c.h.b16 %v628
    %v664 = vunpack.c.l.b16 %v629
    %v665 = vunpack.c.h.b16 %v629
    %v666 = vunpack.c.l.b16 %v630
    %v667 = vunpack.c.h.b16 %v630
    %v668 = vunpack.c.l.b16 %v631
    %v669 = vunpack.c.h.b16 %v631
    %v670 = vunpack.c.l.b16 %v632
    %v671 = vpack.c.b16 %v646, %v646
    %v672 = vpack.c.b16 %v647, %v647
    %v673 = vpack.c.b16 %v648, %v648
    %v674 = vpack.c.b16 %v649, %v649
    %v675 = vpack.c.b16 %v650, %v650
    %v676 = vpack.c.b16 %v651, %v651
    %v677 = vpack.c.b16 %v652, %v652
    %v678 = vpack.c.b16 %v653, %v653
    %v679 = vpack.c.b16 %v654, %v654
    %v680 = vpack.c.b16 %v655, %v655
    %v681 = vpack.c.b16 %v656, %v656
    %v682 = vpack.c.b16 %v657, %v657
    %v683 = vpack.c.b16 %v658, %v658
    %v684 = vpack.c.b16 %v659, %v659
    %v685 = vpack.c.b16 %v660, %v660
    %v686 = vpack.c.b16 %v661, %v661
    %v687 = vpack.c.b16 %v662, %v662
    %v688 = vpack.c.b16 %v663, %v663
    %v689 = vpack.c.b16 %v664, %v664
    %v690 = vpack.c.b16 %v665, %v665
    %v691 = vpack.c.b16 %v666, %v666
    %v692 = vpack.c.b16 %v667, %v667
    %v693 = vpack.c.b16 %v668, %v668
    %v694 = vpack.c.b16 %v669, %v669
    %v695 = vpack.c.b16 %v670, %v670
    %721 = vst [vmem:[%s3] sm:$0xf] %v671
    %722 = vst [vmem:[%s3 + $0x4] sm:$0xf] %v672
    %723 = vst [vmem:[%s3 + $0x8] sm:$0xf] %v673
    %724 = vst [vmem:[%s3 + $0xc] sm:$0xf] %v674
    %725 = vst [vmem:[%s3 + $0x10] sm:$0xf] %v675
    %726 = vst [vmem:[%s3 + $0x14] sm:$0xf] %v676
    %727 = vst [vmem:[%s3 + $0x18] sm:$0xf] %v677
    %728 = vst [vmem:[%s3 + $0x1c] sm:$0xf] %v678
    %729 = vst [vmem:[%s3 + $0x20] sm:$0xf] %v679
    %730 = vst [vmem:[%s3 + $0x24] sm:$0xf] %v680
    %731 = vst [vmem:[%s3 + $0x28] sm:$0xf] %v681
    %732 = vst [vmem:[%s3 + $0x2c] sm:$0xf] %v682
    %733 = vst [vmem:[%s3 + $0x30] sm:$0xf] %v683
    %734 = vst [vmem:[%s3 + $0x34] sm:$0xf] %v684
    %735 = vst [vmem:[%s3 + $0x38] sm:$0xf] %v685
    %736 = vst [vmem:[%s3 + $0x3c] sm:$0xf] %v686
    %737 = vst [vmem:[%s3 + $0x40] sm:$0xf] %v687
    %738 = vst [vmem:[%s3 + $0x44] sm:$0xf] %v688
    %739 = vst [vmem:[%s3 + $0x48] sm:$0xf] %v689
    %740 = vst [vmem:[%s3 + $0x4c] sm:$0xf] %v690
    %741 = vst [vmem:[%s3 + $0x50] sm:$0xf] %v691
    %742 = vst [vmem:[%s3 + $0x54] sm:$0xf] %v692
    %743 = vst [vmem:[%s3 + $0x58] sm:$0xf] %v693
    %744 = vst [vmem:[%s3 + $0x5c] sm:$0xf] %v694
    %745 = vst [vmem:[%s3 + $0x60] sm:$0xf] %v695
  $region21: #{dqn_forward.4} parent=0 // pred_fallthru
    _
  // Predicated region
  $region22: #{dqn_forward.4} parent=0 // pred_check
    _
  $region23: #{dqn_forward.4} parent=0 // pred_check_branch
    %747 = sbr.rel (0) target = $region25
  $region24: #{dqn_forward.4} parent=0 // pred_region
    _
  $region25: #{dqn_forward.4} parent=0 // pred_fallthru
    _
  // Predicated region
  $region26: #{dqn_forward.4} parent=0 // pred_check
    _
  $region27: #{dqn_forward.4} parent=0 // pred_check_branch
    %749 = sbr.rel (0) target = $region29
  $region28: #{dqn_forward.4} parent=0 // pred_region
    _
  $region29: #{dqn_forward.4} parent=0 // pred_fallthru
    _

// kernel: dqn_forward.5
$region0: #{dqn_forward.5}
  #allocation0 [shape = 'u32[]', space=smem, size = 0x4, offset = 0x4, fixed_abs, tag = 'smem constant byte address 0x4 - core index']
  #allocation1 [shape = 'u32[144,128]{1,0:T(1,128)}', space=vmem, size = 0x12000, scoped, tag = 'internal scratch']
  #allocation2 [shape = 'f32[32,128]{1,0:T(8,128)}', space=vmem, size = 0x4000, scoped, tag = 'scratch operand']
  %s0 = inlined_call_operand.vmem [shape: bf16[32,512], index: 0, kind: input, shape index: {}]
  %s1 = inlined_call_operand.vmem [shape: bf16[512,128], index: 1, kind: input, shape index: {}]
  %s2 = inlined_call_operand.vmem [shape: f32[1,128], index: 2, kind: input, shape index: {}]
  %s3 = inlined_call_operand.vmem [shape: bf16[32,128], index: 3, kind: output, shape index: {}]
  %s4 = sld [smem:[#allocation0]]
  $region30: #{dqn_forward.5} parent=0
    _
  %s6 = ssub.s32 1, %s4
  %s7 = scalar_select 0, %s6, %s4
  // Predicated region
  $region2: #{dqn_forward.5} parent=0 // pred_check
    _
  $region3: #{dqn_forward.5} parent=0 // pred_check_branch
    %9 = sbr.rel (0) target = $region5
  $region4: #{dqn_forward.5} parent=0 // pred_region
    _
  $region5: #{dqn_forward.5} parent=0 // pred_fallthru
    _
  // Predicated region
  $region6: #{dqn_forward.5} parent=0 // pred_check
    _
  $region7: #{dqn_forward.5} parent=0 // pred_check_branch
    %11 = sbr.rel (0) target = $region9
  $region8: #{dqn_forward.5} parent=0 // pred_region
    _
  $region9: #{dqn_forward.5} parent=0 // pred_fallthru
    _
  // Predicated region
  $region10: #{dqn_forward.5} parent=0 // pred_check
    _
  $region11: #{dqn_forward.5} parent=0 // pred_check_branch
    %13 = sbr.rel (0) target = $region13
  $region12: #{dqn_forward.5} parent=0 // pred_region
    _
  $region13: #{dqn_forward.5} parent=0 // pred_fallthru
    _
  %p15 = scmp.eq.s32.totalorder 0, 0
  // Predicated region
  $region14: #{dqn_forward.5} parent=0 // pred_check
    %p16 = pneg %p15
  $region15: #{dqn_forward.5} parent=0 // pred_check_branch
    %18 = sbr.rel (%p16) target = $region17
  $region16: #{dqn_forward.5} parent=0 // pred_region
    %19 = vst [vmem:[#allocation2] sm:$0xff] 0.0
    %20 = vst [vmem:[#allocation2 + $0x8] sm:$0xff] 0.0
    %21 = vst [vmem:[#allocation2 + $0x10] sm:$0xff] 0.0
    %22 = vst [vmem:[#allocation2 + $0x18] sm:$0xff] 0.0
  $region17: #{dqn_forward.5} parent=0 // pred_fallthru
    _
  %v23 = vld [vmem:[#allocation2] sm:$0xff]
  %v24 = vld [vmem:[#allocation2 + $0x8] sm:$0xff]
  %v25 = vld [vmem:[#allocation2 + $0x10] sm:$0xff]
  %v26 = vld [vmem:[#allocation2 + $0x18] sm:$0xff]
  %v27 = vld [vmem:[%s0] sm:$0xff]
  %v28 = vld [vmem:[%s0 + $0x8] sm:$0xff]
  %v29 = vld [vmem:[%s0 + $0x10] sm:$0xff]
  %v30 = vld [vmem:[%s0 + $0x18] sm:$0xff]
  %v31 = vld [vmem:[%s0 + $0x20] sm:$0xff]
  %v32 = vld [vmem:[%s0 + $0x28] sm:$0xff]
  %v33 = vld [vmem:[%s0 + $0x30] sm:$0xff]
  %v34 = vld [vmem:[%s0 + $0x38] sm:$0xff]
  %v35 = vld [vmem:[%s1] sm:$0xf]
  %v36 = vld [vmem:[%s1 + $0x4] sm:$0xf]
  %v37 = vld [vmem:[%s1 + $0x8] sm:$0xf]
  %v38 = vld [vmem:[%s1 + $0xc] sm:$0xf]
  %v39 = vld [vmem:[%s1 + $0x10] sm:$0xf]
  %v40 = vld [vmem:[%s1 + $0x14] sm:$0xf]
  %v41 = vld [vmem:[%s1 + $0x18] sm:$0xf]
  %v42 = vld [vmem:[%s1 + $0x1c] sm:$0xf]
  %v43 = vld [vmem:[%s1 + $0x20] sm:$0xf]
  %v44 = vld [vmem:[%s1 + $0x24] sm:$0xf]
  %v45 = vld [vmem:[%s1 + $0x28] sm:$0xf]
  %v46 = vld [vmem:[%s1 + $0x2c] sm:$0xf]
  %v47 = vld [vmem:[%s1 + $0x30] sm:$0xf]
  %v48 = vld [vmem:[%s1 + $0x34] sm:$0xf]
  %v49 = vld [vmem:[%s1 + $0x38] sm:$0xf]
  %v50 = vld [vmem:[%s1 + $0x3c] sm:$0xf]
  %v51 = vld [vmem:[%s1 + $0x40] sm:$0xf]
  %v52 = vld [vmem:[%s1 + $0x44] sm:$0xf]
  %v53 = vld [vmem:[%s1 + $0x48] sm:$0xf]
  %v54 = vld [vmem:[%s1 + $0x4c] sm:$0xf]
  %v55 = vld [vmem:[%s1 + $0x50] sm:$0xf]
  %v56 = vld [vmem:[%s1 + $0x54] sm:$0xf]
  %v57 = vld [vmem:[%s1 + $0x58] sm:$0xf]
  %v58 = vld [vmem:[%s1 + $0x5c] sm:$0xf]
  %v59 = vld [vmem:[%s1 + $0x60] sm:$0xf]
  %v60 = vld [vmem:[%s1 + $0x64] sm:$0xf]
  %v61 = vld [vmem:[%s1 + $0x68] sm:$0xf]
  %v62 = vld [vmem:[%s1 + $0x6c] sm:$0xf]
  %v63 = vld [vmem:[%s1 + $0x70] sm:$0xf]
  %v64 = vld [vmem:[%s1 + $0x74] sm:$0xf]
  %v65 = vld [vmem:[%s1 + $0x78] sm:$0xf]
  %v66 = vld [vmem:[%s1 + $0x7c] sm:$0xf]
  %v67 = vld [vmem:[%s1 + $0x80] sm:$0xf]
  %v68 = vld [vmem:[%s1 + $0x84] sm:$0xf]
  %v69 = vld [vmem:[%s1 + $0x88] sm:$0xf]
  %v70 = vld [vmem:[%s1 + $0x8c] sm:$0xf]
  %v71 = vld [vmem:[%s1 + $0x90] sm:$0xf]
  %v72 = vld [vmem:[%s1 + $0x94] sm:$0xf]
  %v73 = vld [vmem:[%s1 + $0x98] sm:$0xf]
  %v74 = vld [vmem:[%s1 + $0x9c] sm:$0xf]
  %v75 = vld [vmem:[%s1 + $0xa0] sm:$0xf]
  %v76 = vld [vmem:[%s1 + $0xa4] sm:$0xf]
  %v77 = vld [vmem:[%s1 + $0xa8] sm:$0xf]
  %v78 = vld [vmem:[%s1 + $0xac] sm:$0xf]
  %v79 = vld [vmem:[%s1 + $0xb0] sm:$0xf]
  %v80 = vld [vmem:[%s1 + $0xb4] sm:$0xf]
  %v81 = vld [vmem:[%s1 + $0xb8] sm:$0xf]
  %v82 = vld [vmem:[%s1 + $0xbc] sm:$0xf]
  %v83 = vld [vmem:[%s1 + $0xc0] sm:$0xf]
  %v84 = vld [vmem:[%s1 + $0xc4] sm:$0xf]
  %v85 = vld [vmem:[%s1 + $0xc8] sm:$0xf]
  %v86 = vld [vmem:[%s1 + $0xcc] sm:$0xf]
  %v87 = vld [vmem:[%s1 + $0xd0] sm:$0xf]
  %v88 = vld [vmem:[%s1 + $0xd4] sm:$0xf]
  %v89 = vld [vmem:[%s1 + $0xd8] sm:$0xf]
  %v90 = vld [vmem:[%s1 + $0xdc] sm:$0xf]
  %v91 = vld [vmem:[%s1 + $0xe0] sm:$0xf]
  %v92 = vld [vmem:[%s1 + $0xe4] sm:$0xf]
  %v93 = vld [vmem:[%s1 + $0xe8] sm:$0xf]
  %v94 = vld [vmem:[%s1 + $0xec] sm:$0xf]
  %v95 = vld [vmem:[%s1 + $0xf0] sm:$0xf]
  %v96 = vld [vmem:[%s1 + $0xf4] sm:$0xf]
  %v97 = vld [vmem:[%s1 + $0xf8] sm:$0xf]
  %v98 = vld [vmem:[%s1 + $0xfc] sm:$0xf]
  %v107 = vunpack.c.l.b16 %v27
  %v108 = vunpack.c.h.b16 %v27
  %v109 = vunpack.c.l.b16 %v28
  %v110 = vunpack.c.h.b16 %v28
  %v111 = vunpack.c.l.b16 %v29
  %v112 = vunpack.c.h.b16 %v29
  %v113 = vunpack.c.l.b16 %v30
  %v114 = vunpack.c.h.b16 %v30
  %v115 = vunpack.c.l.b16 %v31
  %v116 = vunpack.c.h.b16 %v31
  %v117 = vunpack.c.l.b16 %v32
  %v118 = vunpack.c.h.b16 %v32
  %v119 = vunpack.c.l.b16 %v33
  %v120 = vunpack.c.h.b16 %v33
  %v121 = vunpack.c.l.b16 %v34
  %v122 = vunpack.c.h.b16 %v34
  %v123 = vpack.c.b16 %v111, %v107
  %v124 = vpack.c.b16 %v112, %v108
  %v125 = vpack.c.b16 %v113, %v109
  %v126 = vpack.c.b16 %v114, %v110
  %v127 = vpack.c.b16 %v119, %v115
  %v128 = vpack.c.b16 %v120, %v116
  %v129 = vpack.c.b16 %v121, %v117
  %v130 = vpack.c.b16 %v122, %v118
  %v203 = vunpack.c.l.b16 %v35
  %v204 = vunpack.c.l.b16 %v36
  %v205 = vunpack.c.l.b16 %v37
  %v206 = vunpack.c.l.b16 %v38
  %v207 = vunpack.c.l.b16 %v39
  %v208 = vunpack.c.l.b16 %v40
  %v209 = vunpack.c.l.b16 %v41
  %v210 = vunpack.c.l.b16 %v42
  %v211 = vunpack.c.l.b16 %v43
  %v212 = vunpack.c.l.b16 %v44
  %v213 = vunpack.c.l.b16 %v45
  %v214 = vunpack.c.l.b16 %v46
  %v215 = vunpack.c.l.b16 %v47
  %v216 = vunpack.c.l.b16 %v48
  %v217 = vunpack.c.l.b16 %v49
  %v218 = vunpack.c.l.b16 %v50
  %v219 = vunpack.c.l.b16 %v51
  %v220 = vunpack.c.l.b16 %v52
  %v221 = vunpack.c.l.b16 %v53
  %v222 = vunpack.c.l.b16 %v54
  %v223 = vunpack.c.l.b16 %v55
  %v224 = vunpack.c.l.b16 %v56
  %v225 = vunpack.c.l.b16 %v57
  %v226 = vunpack.c.l.b16 %v58
  %v227 = vunpack.c.l.b16 %v59
  %v228 = vunpack.c.l.b16 %v60
  %v229 = vunpack.c.l.b16 %v61
  %v230 = vunpack.c.l.b16 %v62
  %v231 = vunpack.c.l.b16 %v63
  %v232 = vunpack.c.l.b16 %v64
  %v233 = vunpack.c.l.b16 %v65
  %v234 = vunpack.c.l.b16 %v66
  %v235 = vunpack.c.l.b16 %v67
  %v236 = vunpack.c.l.b16 %v68
  %v237 = vunpack.c.l.b16 %v69
  %v238 = vunpack.c.l.b16 %v70
  %v239 = vunpack.c.l.b16 %v71
  %v240 = vunpack.c.l.b16 %v72
  %v241 = vunpack.c.l.b16 %v73
  %v242 = vunpack.c.l.b16 %v74
  %v243 = vunpack.c.l.b16 %v75
  %v244 = vunpack.c.l.b16 %v76
  %v245 = vunpack.c.l.b16 %v77
  %v246 = vunpack.c.l.b16 %v78
  %v247 = vunpack.c.l.b16 %v79
  %v248 = vunpack.c.l.b16 %v80
  %v249 = vunpack.c.l.b16 %v81
  %v250 = vunpack.c.l.b16 %v82
  %v251 = vunpack.c.l.b16 %v83
  %v252 = vunpack.c.l.b16 %v84
  %v253 = vunpack.c.l.b16 %v85
  %v254 = vunpack.c.l.b16 %v86
  %v255 = vunpack.c.l.b16 %v87
  %v256 = vunpack.c.l.b16 %v88
  %v257 = vunpack.c.l.b16 %v89
  %v258 = vunpack.c.l.b16 %v90
  %v259 = vunpack.c.l.b16 %v91
  %v260 = vunpack.c.l.b16 %v92
  %v261 = vunpack.c.l.b16 %v93
  %v262 = vunpack.c.l.b16 %v94
  %v263 = vunpack.c.l.b16 %v95
  %v264 = vunpack.c.l.b16 %v96
  %v265 = vunpack.c.l.b16 %v97
  %v266 = vunpack.c.l.b16 %v98
  %v267 = vpack.c.b16 %v204, %v203
  %v268 = vpack.c.b16 %v206, %v205
  %v269 = vpack.c.b16 %v208, %v207
  %v270 = vpack.c.b16 %v210, %v209
  %v271 = vpack.c.b16 %v212, %v211
  %v272 = vpack.c.b16 %v214, %v213
  %v273 = vpack.c.b16 %v216, %v215
  %v274 = vpack.c.b16 %v218, %v217
  %v275 = vpack.c.b16 %v220, %v219
  %v276 = vpack.c.b16 %v222, %v221
  %v277 = vpack.c.b16 %v224, %v223
  %v278 = vpack.c.b16 %v226, %v225
  %v279 = vpack.c.b16 %v228, %v227
  %v280 = vpack.c.b16 %v230, %v229
  %v281 = vpack.c.b16 %v232, %v231
  %v282 = vpack.c.b16 %v234, %v233
  %v283 = vpack.c.b16 %v236, %v235
  %v284 = vpack.c.b16 %v238, %v237
  %v285 = vpack.c.b16 %v240, %v239
  %v286 = vpack.c.b16 %v242, %v241
  %v287 = vpack.c.b16 %v244, %v243
  %v288 = vpack.c.b16 %v246, %v245
  %v289 = vpack.c.b16 %v248, %v247
  %v290 = vpack.c.b16 %v250, %v249
  %v291 = vpack.c.b16 %v252, %v251
  %v292 = vpack.c.b16 %v254, %v253
  %v293 = vpack.c.b16 %v256, %v255
  %v294 = vpack.c.b16 %v258, %v257
  %v295 = vpack.c.b16 %v260, %v259
  %v296 = vpack.c.b16 %v262, %v261
  %v297 = vpack.c.b16 %v264, %v263
  %v298 = vpack.c.b16 %v266, %v265
  %331 = vmatprep.subr.bf16.mxu0 0
  %332 = vmatpush1.bf16.msra.mxu0 %v267
  %333 = vmatprep.subr.bf16.mxu0 0
  %334 = vmatpush1.bf16.msra.mxu0 %v268
  %335 = vmatprep.subr.bf16.mxu0 0
  %336 = vmatpush1.bf16.msra.mxu0 %v269
  %337 = vmatprep.subr.bf16.mxu0 0
  %338 = vmatpush1.bf16.msra.mxu0 %v270
  %339 = vmatprep.subr.bf16.mxu0 0
  %340 = vmatpush1.bf16.msra.mxu0 %v271
  %341 = vmatprep.subr.bf16.mxu0 0
  %342 = vmatpush1.bf16.msra.mxu0 %v272
  %343 = vmatprep.subr.bf16.mxu0 0
  %344 = vmatpush1.bf16.msra.mxu0 %v273
  %345 = vmatprep.subr.bf16.mxu0 0
  %346 = vmatpush1.bf16.msra.mxu0 %v274
  %347 = vmatprep.subr.bf16.mxu0 0
  %348 = vmatpush1.bf16.msra.mxu0 %v275
  %349 = vmatprep.subr.bf16.mxu0 0
  %350 = vmatpush1.bf16.msra.mxu0 %v276
  %351 = vmatprep.subr.bf16.mxu0 0
  %352 = vmatpush1.bf16.msra.mxu0 %v277
  %353 = vmatprep.subr.bf16.mxu0 0
  %354 = vmatpush1.bf16.msra.mxu0 %v278
  %355 = vmatprep.subr.bf16.mxu0 0
  %356 = vmatpush1.bf16.msra.mxu0 %v279
  %357 = vmatprep.subr.bf16.mxu0 0
  %358 = vmatpush1.bf16.msra.mxu0 %v280
  %359 = vmatprep.subr.bf16.mxu0 0
  %360 = vmatpush1.bf16.msra.mxu0 %v281
  %361 = vmatprep.subr.bf16.mxu0 0
  %362 = vmatpush1.bf16.msra.mxu0 %v282
  %363 = vmatprep.mubr.bf16.mxu0 %v124
  %364 = vmatmul.mubr.bf16.gmra.mrb[0].mxu0 %v123
  %v365 = vpop.f32.mrb[0].mxu0
  %v366 = vadd.f32 0.0, %v365
  %v367 = vpop.f32.mrb[0].mxu0
  %v368 = vpop.f32.mrb[0].mxu0
  %v369 = vadd.f32 0.0, %v368
  %v370 = vpop.f32.mrb[0].mxu0
  %371 = vmatprep.mubr.bf16.mxu0 %v128
  %372 = vmatmul.mubr.bf16.gmra.mrb[0].mxu0 %v127
  %v373 = vpop.f32.mrb[0].mxu0
  %v374 = vadd.f32 0.0, %v373
  %v375 = vpop.f32.mrb[0].mxu0
  %v376 = vpop.f32.mrb[0].mxu0
  %v377 = vadd.f32 0.0, %v376
  %v378 = vpop.f32.mrb[0].mxu0
  %379 = vdwg.mxu0
  %380 = vmatprep.subr.bf16.mxu0 0
  %381 = vmatpush1.bf16.msra.mxu0 %v283
  %382 = vmatprep.subr.bf16.mxu0 0
  %383 = vmatpush1.bf16.msra.mxu0 %v284
  %384 = vmatprep.subr.bf16.mxu0 0
  %385 = vmatpush1.bf16.msra.mxu0 %v285
  %386 = vmatprep.subr.bf16.mxu0 0
  %387 = vmatpush1.bf16.msra.mxu0 %v286
  %388 = vmatprep.subr.bf16.mxu0 0
  %389 = vmatpush1.bf16.msra.mxu0 %v287
  %390 = vmatprep.subr.bf16.mxu0 0
  %391 = vmatpush1.bf16.msra.mxu0 %v288
  %392 = vmatprep.subr.bf16.mxu0 0
  %393 = vmatpush1.bf16.msra.mxu0 %v289
  %394 = vmatprep.subr.bf16.mxu0 0
  %395 = vmatpush1.bf16.msra.mxu0 %v290
  %396 = vmatprep.subr.bf16.mxu0 0
  %397 = vmatpush1.bf16.msra.mxu0 %v291
  %398 = vmatprep.subr.bf16.mxu0 0
  %399 = vmatpush1.bf16.msra.mxu0 %v292
  %400 = vmatprep.subr.bf16.mxu0 0
  %401 = vmatpush1.bf16.msra.mxu0 %v293
  %402 = vmatprep.subr.bf16.mxu0 0
  %403 = vmatpush1.bf16.msra.mxu0 %v294
  %404 = vmatprep.subr.bf16.mxu0 0
  %405 = vmatpush1.bf16.msra.mxu0 %v295
  %406 = vmatprep.subr.bf16.mxu0 0
  %407 = vmatpush1.bf16.msra.mxu0 %v296
  %408 = vmatprep.subr.bf16.mxu0 0
  %409 = vmatpush1.bf16.msra.mxu0 %v297
  %410 = vmatprep.subr.bf16.mxu0 0
  %411 = vmatpush1.bf16.msra.mxu0 %v298
  %412 = vmatprep.mubr.bf16.mxu0 %v126
  %413 = vmatmul.mubr.bf16.gmra.mrb[0].mxu0 %v125
  %v414 = vpop.f32.mrb[0].mxu0
  %v415 = vadd.f32 %v366, %v414
  %v416 = vpop.f32.mrb[0].mxu0
  %v417 = vpop.f32.mrb[0].mxu0
  %v418 = vadd.f32 %v369, %v417
  %v419 = vpop.f32.mrb[0].mxu0
  %420 = vmatprep.mubr.bf16.mxu0 %v130
  %421 = vmatmul.mubr.bf16.gmra.mrb[0].mxu0 %v129
  %v422 = vpop.f32.mrb[0].mxu0
  %v423 = vadd.f32 %v374, %v422
  %v424 = vpop.f32.mrb[0].mxu0
  %v425 = vpop.f32.mrb[0].mxu0
  %v426 = vadd.f32 %v377, %v425
  %v427 = vpop.f32.mrb[0].mxu0
  %428 = vdwg.mxu0
  %v429 = vadd.f32 %v23, %v415
  %v430 = vadd.f32 %v24, %v418
  %v431 = vadd.f32 %v25, %v423
  %v432 = vadd.f32 %v26, %v426
  %433 = vst [vmem:[#allocation2] sm:$0xff] %v429
  %434 = vst [vmem:[#allocation2 + $0x8] sm:$0xff] %v430
  %435 = vst [vmem:[#allocation2 + $0x10] sm:$0xff] %v431
  %436 = vst [vmem:[#allocation2 + $0x18] sm:$0xff] %v432
  // Predicated region
  $region18: #{dqn_forward.5} parent=0 // pred_check
    %p437 = pneg %p15
  $region19: #{dqn_forward.5} parent=0 // pred_check_branch
    %439 = sbr.rel (%p437) target = $region21
  $region20: #{dqn_forward.5} parent=0 // pred_region
    %v440 = vld [vmem:[#allocation2] sm:$0xff]
    %v441 = vld [vmem:[#allocation2 + $0x8] sm:$0xff]
    %v442 = vld [vmem:[#allocation2 + $0x10] sm:$0xff]
    %v443 = vld [vmem:[#allocation2 + $0x18] sm:$0xff]
    %v444 = vld [vmem:[%s2] sm:$0x1]
    %v446 = vlaneseq
    %v447 = vshrl.u32 %v446, 7
    %v448 = vsub.s32 0, %v447
    %v449 = vrot.slane %v444, %v448
    %v451 = vadd.f32 %v440, %v449
    %v452 = vadd.f32 %v441, %v449
    %v453 = vadd.f32 %v442, %v449
    %v454 = vadd.f32 %v443, %v449
    %v455 = vmax.f32 %v451, 0.0
    %v456 = vmax.f32 %v452, 0.0
    %v457 = vmax.f32 %v453, 0.0
    %v458 = vmax.f32 %v454, 0.0
    %v459 = vpack.c.bf16 %v456, %v455
    %v460 = vpack.c.bf16 %v458, %v457
    %v463 = vunpack.c.l.b16 %v459
    %v464 = vunpack.c.h.b16 %v459
    %v465 = vunpack.c.l.b16 %v460
    %v466 = vunpack.c.h.b16 %v460
    %v467 = vpack.c.b16 %v463, %v463
    %v468 = vpack.c.b16 %v464, %v464
    %v469 = vpack.c.b16 %v465, %v465
    %v470 = vpack.c.b16 %v466, %v466
    %475 = vst [vmem:[%s3] sm:$0xf] %v467
    %476 = vst [vmem:[%s3 + $0x4] sm:$0xf] %v468
    %477 = vst [vmem:[%s3 + $0x8] sm:$0xf] %v469
    %478 = vst [vmem:[%s3 + $0xc] sm:$0xf] %v470
  $region21: #{dqn_forward.5} parent=0 // pred_fallthru
    _
  // Predicated region
  $region22: #{dqn_forward.5} parent=0 // pred_check
    _
  $region23: #{dqn_forward.5} parent=0 // pred_check_branch
    %480 = sbr.rel (0) target = $region25
  $region24: #{dqn_forward.5} parent=0 // pred_region
    _
  $region25: #{dqn_forward.5} parent=0 // pred_fallthru
    _
  // Predicated region
  $region26: #{dqn_forward.5} parent=0 // pred_check
    _
  $region27: #{dqn_forward.5} parent=0 // pred_check_branch
    %482 = sbr.rel (0) target = $region29
  $region28: #{dqn_forward.5} parent=0 // pred_region
    _
  $region29: #{dqn_forward.5} parent=0 // pred_fallthru
    _

// kernel: dqn_forward.6
$region0: #{dqn_forward.6}
  #allocation0 [shape = 'u32[]', space=smem, size = 0x4, offset = 0x4, fixed_abs, tag = 'smem constant byte address 0x4 - core index']
  #allocation1 [shape = 'u32[144,128]{1,0:T(1,128)}', space=vmem, size = 0x12000, scoped, tag = 'internal scratch']
  #allocation2 [shape = 'f32[8,128]{1,0:T(8,128)}', space=vmem, size = 0x1000, scoped, tag = 'scratch operand']
  %s0 = inlined_call_operand.vmem [shape: bf16[8,576], index: 0, kind: input, shape index: {}]
  %s1 = inlined_call_operand.vmem [shape: bf16[576,128], index: 1, kind: input, shape index: {}]
  %s2 = inlined_call_operand.vmem [shape: f32[1,128], index: 2, kind: input, shape index: {}]
  %s3 = inlined_call_operand.vmem [shape: bf16[8,128], index: 3, kind: output, shape index: {}]
  %s4 = sld [smem:[#allocation0]]
  $region30: #{dqn_forward.6} parent=0
    _
  %s6 = ssub.s32 1, %s4
  %s7 = scalar_select 0, %s6, %s4
  // Predicated region
  $region2: #{dqn_forward.6} parent=0 // pred_check
    _
  $region3: #{dqn_forward.6} parent=0 // pred_check_branch
    %9 = sbr.rel (0) target = $region5
  $region4: #{dqn_forward.6} parent=0 // pred_region
    _
  $region5: #{dqn_forward.6} parent=0 // pred_fallthru
    _
  // Predicated region
  $region6: #{dqn_forward.6} parent=0 // pred_check
    _
  $region7: #{dqn_forward.6} parent=0 // pred_check_branch
    %11 = sbr.rel (0) target = $region9
  $region8: #{dqn_forward.6} parent=0 // pred_region
    _
  $region9: #{dqn_forward.6} parent=0 // pred_fallthru
    _
  // Predicated region
  $region10: #{dqn_forward.6} parent=0 // pred_check
    _
  $region11: #{dqn_forward.6} parent=0 // pred_check_branch
    %13 = sbr.rel (0) target = $region13
  $region12: #{dqn_forward.6} parent=0 // pred_region
    _
  $region13: #{dqn_forward.6} parent=0 // pred_fallthru
    _
  %p15 = scmp.eq.s32.totalorder 0, 0
  // Predicated region
  $region14: #{dqn_forward.6} parent=0 // pred_check
    %p16 = pneg %p15
  $region15: #{dqn_forward.6} parent=0 // pred_check_branch
    %18 = sbr.rel (%p16) target = $region17
  $region16: #{dqn_forward.6} parent=0 // pred_region
    %19 = vst [vmem:[#allocation2] sm:$0xff] 0.0
  $region17: #{dqn_forward.6} parent=0 // pred_fallthru
    _
  %v20 = vld [vmem:[#allocation2] sm:$0xff]
  %v21 = vld [vmem:[%s0] sm:$0xff]
  %v22 = vld [vmem:[%s0 + $0x8] sm:$0xff]
  %v23 = vld [vmem:[%s0 + $0x10] sm:$0xf]
  %v24 = vld [vmem:[%s1] sm:$0xf]
  %v25 = vld [vmem:[%s1 + $0x4] sm:$0xf]
  %v26 = vld [vmem:[%s1 + $0x8] sm:$0xf]
  %v27 = vld [vmem:[%s1 + $0xc] sm:$0xf]
  %v28 = vld [vmem:[%s1 + $0x10] sm:$0xf]
  %v29 = vld [vmem:[%s1 + $0x14] sm:$0xf]
  %v30 = vld [vmem:[%s1 + $0x18] sm:$0xf]
  %v31 = vld [vmem:[%s1 + $0x1c] sm:$0xf]
  %v32 = vld [vmem:[%s1 + $0x20] sm:$0xf]
  %v33 = vld [vmem:[%s1 + $0x24] sm:$0xf]
  %v34 = vld [vmem:[%s1 + $0x28] sm:$0xf]
  %v35 = vld [vmem:[%s1 + $0x2c] sm:$0xf]
  %v36 = vld [vmem:[%s1 + $0x30] sm:$0xf]
  %v37 = vld [vmem:[%s1 + $0x34] sm:$0xf]
  %v38 = vld [vmem:[%s1 + $0x38] sm:$0xf]
  %v39 = vld [vmem:[%s1 + $0x3c] sm:$0xf]
  %v40 = vld [vmem:[%s1 + $0x40] sm:$0xf]
  %v41 = vld [vmem:[%s1 + $0x44] sm:$0xf]
  %v42 = vld [vmem:[%s1 + $0x48] sm:$0xf]
  %v43 = vld [vmem:[%s1 + $0x4c] sm:$0xf]
  %v44 = vld [vmem:[%s1 + $0x50] sm:$0xf]
  %v45 = vld [vmem:[%s1 + $0x54] sm:$0xf]
  %v46 = vld [vmem:[%s1 + $0x58] sm:$0xf]
  %v47 = vld [vmem:[%s1 + $0x5c] sm:$0xf]
  %v48 = vld [vmem:[%s1 + $0x60] sm:$0xf]
  %v49 = vld [vmem:[%s1 + $0x64] sm:$0xf]
  %v50 = vld [vmem:[%s1 + $0x68] sm:$0xf]
  %v51 = vld [vmem:[%s1 + $0x6c] sm:$0xf]
  %v52 = vld [vmem:[%s1 + $0x70] sm:$0xf]
  %v53 = vld [vmem:[%s1 + $0x74] sm:$0xf]
  %v54 = vld [vmem:[%s1 + $0x78] sm:$0xf]
  %v55 = vld [vmem:[%s1 + $0x7c] sm:$0xf]
  %v56 = vld [vmem:[%s1 + $0x80] sm:$0xf]
  %v57 = vld [vmem:[%s1 + $0x84] sm:$0xf]
  %v58 = vld [vmem:[%s1 + $0x88] sm:$0xf]
  %v59 = vld [vmem:[%s1 + $0x8c] sm:$0xf]
  %v60 = vld [vmem:[%s1 + $0x90] sm:$0xf]
  %v61 = vld [vmem:[%s1 + $0x94] sm:$0xf]
  %v62 = vld [vmem:[%s1 + $0x98] sm:$0xf]
  %v63 = vld [vmem:[%s1 + $0x9c] sm:$0xf]
  %v64 = vld [vmem:[%s1 + $0xa0] sm:$0xf]
  %v65 = vld [vmem:[%s1 + $0xa4] sm:$0xf]
  %v66 = vld [vmem:[%s1 + $0xa8] sm:$0xf]
  %v67 = vld [vmem:[%s1 + $0xac] sm:$0xf]
  %v68 = vld [vmem:[%s1 + $0xb0] sm:$0xf]
  %v69 = vld [vmem:[%s1 + $0xb4] sm:$0xf]
  %v70 = vld [vmem:[%s1 + $0xb8] sm:$0xf]
  %v71 = vld [vmem:[%s1 + $0xbc] sm:$0xf]
  %v72 = vld [vmem:[%s1 + $0xc0] sm:$0xf]
  %v73 = vld [vmem:[%s1 + $0xc4] sm:$0xf]
  %v74 = vld [vmem:[%s1 + $0xc8] sm:$0xf]
  %v75 = vld [vmem:[%s1 + $0xcc] sm:$0xf]
  %v76 = vld [vmem:[%s1 + $0xd0] sm:$0xf]
  %v77 = vld [vmem:[%s1 + $0xd4] sm:$0xf]
  %v78 = vld [vmem:[%s1 + $0xd8] sm:$0xf]
  %v79 = vld [vmem:[%s1 + $0xdc] sm:$0xf]
  %v80 = vld [vmem:[%s1 + $0xe0] sm:$0xf]
  %v81 = vld [vmem:[%s1 + $0xe4] sm:$0xf]
  %v82 = vld [vmem:[%s1 + $0xe8] sm:$0xf]
  %v83 = vld [vmem:[%s1 + $0xec] sm:$0xf]
  %v84 = vld [vmem:[%s1 + $0xf0] sm:$0xf]
  %v85 = vld [vmem:[%s1 + $0xf4] sm:$0xf]
  %v86 = vld [vmem:[%s1 + $0xf8] sm:$0xf]
  %v87 = vld [vmem:[%s1 + $0xfc] sm:$0xf]
  %v88 = vld [vmem:[%s1 + $0x100] sm:$0xf]
  %v89 = vld [vmem:[%s1 + $0x104] sm:$0xf]
  %v90 = vld [vmem:[%s1 + $0x108] sm:$0xf]
  %v91 = vld [vmem:[%s1 + $0x10c] sm:$0xf]
  %v92 = vld [vmem:[%s1 + $0x110] sm:$0xf]
  %v93 = vld [vmem:[%s1 + $0x114] sm:$0xf]
  %v94 = vld [vmem:[%s1 + $0x118] sm:$0xf]
  %v95 = vld [vmem:[%s1 + $0x11c] sm:$0xf]
  %v99 = vunpack.c.l.b16 %v21
  %v100 = vunpack.c.h.b16 %v21
  %v101 = vunpack.c.l.b16 %v22
  %v102 = vunpack.c.h.b16 %v22
  %v103 = vunpack.c.l.b16 %v23
  %v104 = vpack.c.b16 %v99, %v99
  %v105 = vpack.c.b16 %v100, %v100
  %v106 = vpack.c.b16 %v101, %v101
  %v107 = vpack.c.b16 %v102, %v102
  %v108 = vpack.c.b16 %v103, %v103
  %v185 = vunpack.c.l.b16 %v24
  %v186 = vunpack.c.l.b16 %v25
  %v187 = vunpack.c.l.b16 %v26
  %v188 = vunpack.c.l.b16 %v27
  %v189 = vunpack.c.l.b16 %v28
  %v190 = vunpack.c.l.b16 %v29
  %v191 = vunpack.c.l.b16 %v30
  %v192 = vunpack.c.l.b16 %v31
  %v193 = vunpack.c.l.b16 %v32
  %v194 = vunpack.c.l.b16 %v33
  %v195 = vunpack.c.l.b16 %v34
  %v196 = vunpack.c.l.b16 %v35
  %v197 = vunpack.c.l.b16 %v36
  %v198 = vunpack.c.l.b16 %v37
  %v199 = vunpack.c.l.b16 %v38
  %v200 = vunpack.c.l.b16 %v39
  %v201 = vunpack.c.l.b16 %v40
  %v202 = vunpack.c.l.b16 %v41
  %v203 = vunpack.c.l.b16 %v42
  %v204 = vunpack.c.l.b16 %v43
  %v205 = vunpack.c.l.b16 %v44
  %v206 = vunpack.c.l.b16 %v45
  %v207 = vunpack.c.l.b16 %v46
  %v208 = vunpack.c.l.b16 %v47
  %v209 = vunpack.c.l.b16 %v48
  %v210 = vunpack.c.l.b16 %v49
  %v211 = vunpack.c.l.b16 %v50
  %v212 = vunpack.c.l.b16 %v51
  %v213 = vunpack.c.l.b16 %v52
  %v214 = vunpack.c.l.b16 %v53
  %v215 = vunpack.c.l.b16 %v54
  %v216 = vunpack.c.l.b16 %v55
  %v217 = vunpack.c.l.b16 %v56
  %v218 = vunpack.c.l.b16 %v57
  %v219 = vunpack.c.l.b16 %v58
  %v220 = vunpack.c.l.b16 %v59
  %v221 = vunpack.c.l.b16 %v60
  %v222 = vunpack.c.l.b16 %v61
  %v223 = vunpack.c.l.b16 %v62
  %v224 = vunpack.c.l.b16 %v63
  %v225 = vunpack.c.l.b16 %v64
  %v226 = vunpack.c.l.b16 %v65
  %v227 = vunpack.c.l.b16 %v66
  %v228 = vunpack.c.l.b16 %v67
  %v229 = vunpack.c.l.b16 %v68
  %v230 = vunpack.c.l.b16 %v69
  %v231 = vunpack.c.l.b16 %v70
  %v232 = vunpack.c.l.b16 %v71
  %v233 = vunpack.c.l.b16 %v72
  %v234 = vunpack.c.l.b16 %v73
  %v235 = vunpack.c.l.b16 %v74
  %v236 = vunpack.c.l.b16 %v75
  %v237 = vunpack.c.l.b16 %v76
  %v238 = vunpack.c.l.b16 %v77
  %v239 = vunpack.c.l.b16 %v78
  %v240 = vunpack.c.l.b16 %v79
  %v241 = vunpack.c.l.b16 %v80
  %v242 = vunpack.c.l.b16 %v81
  %v243 = vunpack.c.l.b16 %v82
  %v244 = vunpack.c.l.b16 %v83
  %v245 = vunpack.c.l.b16 %v84
  %v246 = vunpack.c.l.b16 %v85
  %v247 = vunpack.c.l.b16 %v86
  %v248 = vunpack.c.l.b16 %v87
  %v249 = vunpack.c.l.b16 %v88
  %v250 = vunpack.c.l.b16 %v89
  %v251 = vunpack.c.l.b16 %v90
  %v252 = vunpack.c.l.b16 %v91
  %v253 = vunpack.c.l.b16 %v92
  %v254 = vunpack.c.l.b16 %v93
  %v255 = vunpack.c.l.b16 %v94
  %v256 = vunpack.c.l.b16 %v95
  %v257 = vpack.c.b16 %v186, %v185
  %v258 = vpack.c.b16 %v188, %v187
  %v259 = vpack.c.b16 %v190, %v189
  %v260 = vpack.c.b16 %v192, %v191
  %v261 = vpack.c.b16 %v194, %v193
  %v262 = vpack.c.b16 %v196, %v195
  %v263 = vpack.c.b16 %v198, %v197
  %v264 = vpack.c.b16 %v200, %v199
  %v265 = vpack.c.b16 %v202, %v201
  %v266 = vpack.c.b16 %v204, %v203
  %v267 = vpack.c.b16 %v206, %v205
  %v268 = vpack.c.b16 %v208, %v207
  %v269 = vpack.c.b16 %v210, %v209
  %v270 = vpack.c.b16 %v212, %v211
  %v271 = vpack.c.b16 %v214, %v213
  %v272 = vpack.c.b16 %v216, %v215
  %v273 = vpack.c.b16 %v218, %v217
  %v274 = vpack.c.b16 %v220, %v219
  %v275 = vpack.c.b16 %v222, %v221
  %v276 = vpack.c.b16 %v224, %v223
  %v277 = vpack.c.b16 %v226, %v225
  %v278 = vpack.c.b16 %v228, %v227
  %v279 = vpack.c.b16 %v230, %v229
  %v280 = vpack.c.b16 %v232, %v231
  %v281 = vpack.c.b16 %v234, %v233
  %v282 = vpack.c.b16 %v236, %v235
  %v283 = vpack.c.b16 %v238, %v237
  %v284 = vpack.c.b16 %v240, %v239
  %v285 = vpack.c.b16 %v242, %v241
  %v286 = vpack.c.b16 %v244, %v243
  %v287 = vpack.c.b16 %v246, %v245
  %v288 = vpack.c.b16 %v248, %v247
  %v289 = vpack.c.b16 %v250, %v249
  %v290 = vpack.c.b16 %v252, %v251
  %v291 = vpack.c.b16 %v254, %v253
  %v292 = vpack.c.b16 %v256, %v255
  %vm329 = vcmask 523264
  %v331 = vsel %vm329, %v108, 0
  %333 = vmatprep.subr.bf16.mxu0 0
  %334 = vmatpush1.bf16.msra.mxu0 %v257
  %335 = vmatprep.subr.bf16.mxu0 0
  %336 = vmatpush1.bf16.msra.mxu0 %v258
  %337 = vmatprep.subr.bf16.mxu0 0
  %338 = vmatpush1.bf16.msra.mxu0 %v259
  %339 = vmatprep.subr.bf16.mxu0 0
  %340 = vmatpush1.bf16.msra.mxu0 %v260
  %341 = vmatprep.subr.bf16.mxu0 0
  %342 = vmatpush1.bf16.msra.mxu0 %v261
  %343 = vmatprep.subr.bf16.mxu0 0
  %344 = vmatpush1.bf16.msra.mxu0 %v262
  %345 = vmatprep.subr.bf16.mxu0 0
  %346 = vmatpush1.bf16.msra.mxu0 %v263
  %347 = vmatprep.subr.bf16.mxu0 0
  %348 = vmatpush1.bf16.msra.mxu0 %v264
  %349 = vmatprep.subr.bf16.mxu0 0
  %350 = vmatpush1.bf16.msra.mxu0 %v265
  %351 = vmatprep.subr.bf16.mxu0 0
  %352 = vmatpush1.bf16.msra.mxu0 %v266
  %353 = vmatprep.subr.bf16.mxu0 0
  %354 = vmatpush1.bf16.msra.mxu0 %v267
  %355 = vmatprep.subr.bf16.mxu0 0
  %356 = vmatpush1.bf16.msra.mxu0 %v268
  %357 = vmatprep.subr.bf16.mxu0 0
  %358 = vmatpush1.bf16.msra.mxu0 %v269
  %359 = vmatprep.subr.bf16.mxu0 0
  %360 = vmatpush1.bf16.msra.mxu0 %v270
  %361 = vmatprep.subr.bf16.mxu0 0
  %362 = vmatpush1.bf16.msra.mxu0 %v271
  %363 = vmatprep.subr.bf16.mxu0 0
  %364 = vmatpush1.bf16.msra.mxu0 %v272
  %365 = vmatprep.mubr.bf16.mxu0 %v105
  %366 = vmatmul.mubr.bf16.gmra.mrb[0].mxu0 %v104
  %v367 = vpop.f32.mrb[0].mxu0
  %v368 = vadd.f32 0.0, %v367
  %v369 = vpop.f32.mrb[0].mxu0
  %v370 = vpop.f32.mrb[0].mxu0
  %v371 = vpop.f32.mrb[0].mxu0
  %372 = vdwg.mxu0
  %373 = vmatprep.subr.bf16.mxu0 0
  %374 = vmatpush1.bf16.msra.mxu0 %v273
  %375 = vmatprep.subr.bf16.mxu0 0
  %376 = vmatpush1.bf16.msra.mxu0 %v274
  %377 = vmatprep.subr.bf16.mxu0 0
  %378 = vmatpush1.bf16.msra.mxu0 %v275
  %379 = vmatprep.subr.bf16.mxu0 0
  %380 = vmatpush1.bf16.msra.mxu0 %v276
  %381 = vmatprep.subr.bf16.mxu0 0
  %382 = vmatpush1.bf16.msra.mxu0 %v277
  %383 = vmatprep.subr.bf16.mxu0 0
  %384 = vmatpush1.bf16.msra.mxu0 %v278
  %385 = vmatprep.subr.bf16.mxu0 0
  %386 = vmatpush1.bf16.msra.mxu0 %v279
  %387 = vmatprep.subr.bf16.mxu0 0
  %388 = vmatpush1.bf16.msra.mxu0 %v280
  %389 = vmatprep.subr.bf16.mxu0 0
  %390 = vmatpush1.bf16.msra.mxu0 %v281
  %391 = vmatprep.subr.bf16.mxu0 0
  %392 = vmatpush1.bf16.msra.mxu0 %v282
  %393 = vmatprep.subr.bf16.mxu0 0
  %394 = vmatpush1.bf16.msra.mxu0 %v283
  %395 = vmatprep.subr.bf16.mxu0 0
  %396 = vmatpush1.bf16.msra.mxu0 %v284
  %397 = vmatprep.subr.bf16.mxu0 0
  %398 = vmatpush1.bf16.msra.mxu0 %v285
  %399 = vmatprep.subr.bf16.mxu0 0
  %400 = vmatpush1.bf16.msra.mxu0 %v286
  %401 = vmatprep.subr.bf16.mxu0 0
  %402 = vmatpush1.bf16.msra.mxu0 %v287
  %403 = vmatprep.subr.bf16.mxu0 0
  %404 = vmatpush1.bf16.msra.mxu0 %v288
  %405 = vmatprep.mubr.bf16.mxu0 %v107
  %406 = vmatmul.mubr.bf16.gmra.mrb[0].mxu0 %v106
  %v407 = vpop.f32.mrb[0].mxu0
  %v408 = vadd.f32 %v368, %v407
  %v409 = vpop.f32.mrb[0].mxu0
  %v410 = vpop.f32.mrb[0].mxu0
  %v411 = vpop.f32.mrb[0].mxu0
  %412 = vdwg.mxu0
  %413 = vmatprep.subr.bf16.mxu0 0
  %414 = vmatpush1.bf16.msra.mxu0 %v289
  %415 = vmatprep.subr.bf16.mxu0 0
  %416 = vmatpush1.bf16.msra.mxu0 %v290
  %417 = vmatprep.subr.bf16.mxu0 0
  %418 = vmatpush1.bf16.msra.mxu0 %v291
  %419 = vmatprep.subr.bf16.mxu0 0
  %420 = vmatpush1.bf16.msra.mxu0 %v292
  %421 = vmatprep.subr.bf16.mxu0 0
  %422 = vmatpush1.bf16.msra.mxu0 0
  %423 = vmatprep.subr.bf16.mxu0 0
  %424 = vmatpush1.bf16.msra.mxu0 0
  %425 = vmatprep.subr.bf16.mxu0 0
  %426 = vmatpush1.bf16.msra.mxu0 0
  %427 = vmatprep.subr.bf16.mxu0 0
  %428 = vmatpush1.bf16.msra.mxu0 0
  %429 = vmatprep.subr.bf16.mxu0 0
  %430 = vmatpush1.bf16.msra.mxu0 0
  %431 = vmatprep.subr.bf16.mxu0 0
  %432 = vmatpush1.bf16.msra.mxu0 0
  %433 = vmatprep.subr.bf16.mxu0 0
  %434 = vmatpush1.bf16.msra.mxu0 0
  %435 = vmatprep.subr.bf16.mxu0 0
  %436 = vmatpush1.bf16.msra.mxu0 0
  %437 = vmatprep.subr.bf16.mxu0 0
  %438 = vmatpush1.bf16.msra.mxu0 0
  %439 = vmatprep.subr.bf16.mxu0 0
  %440 = vmatpush1.bf16.msra.mxu0 0
  %441 = vmatprep.subr.bf16.mxu0 0
  %442 = vmatpush1.bf16.msra.mxu0 0
  %443 = vmatprep.subr.bf16.mxu0 0
  %444 = vmatpush1.bf16.msra.mxu0 0
  %445 = vmatprep.mubr.bf16.mxu0 0
  %446 = vmatmul.mubr.bf16.gmra.mrb[0].mxu0 %v331
  %v447 = vpop.f32.mrb[0].mxu0
  %v448 = vadd.f32 %v408, %v447
  %v449 = vpop.f32.mrb[0].mxu0
  %v450 = vpop.f32.mrb[0].mxu0
  %v451 = vpop.f32.mrb[0].mxu0
  %452 = vdwg.mxu0
  %v453 = vadd.f32 %v20, %v448
  %454 = vst [vmem:[#allocation2] sm:$0xff] %v453
  // Predicated region
  $region18: #{dqn_forward.6} parent=0 // pred_check
    %p455 = pneg %p15
  $region19: #{dqn_forward.6} parent=0 // pred_check_branch
    %457 = sbr.rel (%p455) target = $region21
  $region20: #{dqn_forward.6} parent=0 // pred_region
    %v458 = vld [vmem:[#allocation2] sm:$0xff]
    %v459 = vld [vmem:[%s2] sm:$0x1]
    %v461 = vlaneseq
    %v462 = vshrl.u32 %v461, 7
    %v463 = vsub.s32 0, %v462
    %v464 = vrot.slane %v459, %v463
    %v466 = vadd.f32 %v458, %v464
    %v467 = vmax.f32 %v466, 0.0
    %v468 = vpack.c.bf16 %v467, %v467
    %469 = vst [vmem:[%s3] sm:$0xf] %v468
  $region21: #{dqn_forward.6} parent=0 // pred_fallthru
    _
  // Predicated region
  $region22: #{dqn_forward.6} parent=0 // pred_check
    _
  $region23: #{dqn_forward.6} parent=0 // pred_check_branch
    %471 = sbr.rel (0) target = $region25
  $region24: #{dqn_forward.6} parent=0 // pred_region
    _
  $region25: #{dqn_forward.6} parent=0 // pred_fallthru
    _
  // Predicated region
  $region26: #{dqn_forward.6} parent=0 // pred_check
    _
  $region27: #{dqn_forward.6} parent=0 // pred_check_branch
    %473 = sbr.rel (0) target = $region29
  $region28: #{dqn_forward.6} parent=0 // pred_region
    _
  $region29: #{dqn_forward.6} parent=0 // pred_fallthru
    _

// kernel: dqn_forward.7
$region0: #{dqn_forward.7}
  #allocation0 [shape = 'u32[]', space=smem, size = 0x4, offset = 0x4, fixed_abs, tag = 'smem constant byte address 0x4 - core index']
  #allocation1 [shape = 'u32[144,128]{1,0:T(1,128)}', space=vmem, size = 0x12000, scoped, tag = 'internal scratch']
  %s0 = inlined_call_operand.vmem [shape: bf16[2,256], index: 0, kind: input, shape index: {}]
  %s1 = inlined_call_operand.vmem [shape: bf16[256,512], index: 1, kind: input, shape index: {}]
  %s2 = inlined_call_operand.vmem [shape: f32[1,512], index: 2, kind: input, shape index: {}]
  %s3 = inlined_call_operand.vmem [shape: bf16[512,128], index: 3, kind: input, shape index: {}]
  %s4 = inlined_call_operand.vmem [shape: f32[1,128], index: 4, kind: input, shape index: {}]
  %s5 = inlined_call_operand.hbm [shape: f32[2,128], index: 5, kind: output, shape index: {}]
  %s6 = sld [smem:[#allocation0]]
  $region30: #{dqn_forward.7} parent=0
    _
  %s8 = ssub.s32 1, %s6
  %s9 = scalar_select 0, %s8, %s6
  $region1: #{dqn_forward.7} parent=0
    #allocation2 [shape = 'u8[1024]{0}', space=vmem, size = 0x400, scoped, tag = 'output window, operand 0, single buffered']
    #allocation3 [shape = 's32[1]{0}', space=sflag, size = 0x4, scoped, tag = 'scoped memory for dqn_forward.7']
    %10 = vsyncpa [#allocation3], 0
    // Predicated region
    $region2: #{dqn_forward.7} parent=1 // pred_check
      _
    $region3: #{dqn_forward.7} parent=1 // pred_check_branch
      %12 = sbr.rel (0) target = $region5
    $region4: #{dqn_forward.7} parent=1 // pred_region
      _
    $region5: #{dqn_forward.7} parent=1 // pred_fallthru
      _
    // Predicated region
    $region6: #{dqn_forward.7} parent=1 // pred_check
      _
    $region7: #{dqn_forward.7} parent=1 // pred_check_branch
      %14 = sbr.rel (0) target = $region9
    $region8: #{dqn_forward.7} parent=1 // pred_region
      _
    $region9: #{dqn_forward.7} parent=1 // pred_fallthru
      _
    // Predicated region
    $region10: #{dqn_forward.7} parent=1 // pred_check
      _
    $region11: #{dqn_forward.7} parent=1 // pred_check_branch
      %16 = sbr.rel (0) target = $region13
    $region12: #{dqn_forward.7} parent=1 // pred_region
      _
    $region13: #{dqn_forward.7} parent=1 // pred_fallthru
      _
    // Predicated region
    $region14: #{dqn_forward.7} parent=1 // pred_check
      _
    $region15: #{dqn_forward.7} parent=1 // pred_check_branch
      %18 = sbr.rel (0) target = $region17
    $region16: #{dqn_forward.7} parent=1 // pred_region
      _
    $region17: #{dqn_forward.7} parent=1 // pred_fallthru
      _
    // Predicated region
    $region18: #{dqn_forward.7} parent=1 // pred_check
      _
    $region19: #{dqn_forward.7} parent=1 // pred_check_branch
      %20 = sbr.rel (0) target = $region21
    $region20: #{dqn_forward.7} parent=1 // pred_region
      _
    $region21: #{dqn_forward.7} parent=1 // pred_fallthru
      _
    %v22 = vld [vmem:[%s0] sm:$0x3]
    %v23 = vld [vmem:[%s1] sm:$0xff]
    %v24 = vld [vmem:[%s1 + $0x8] sm:$0xff]
    %v25 = vld [vmem:[%s1 + $0x10] sm:$0xff]
    %v26 = vld [vmem:[%s1 + $0x18] sm:$0xff]
    %v27 = vld [vmem:[%s1 + $0x20] sm:$0xff]
    %v28 = vld [vmem:[%s1 + $0x28] sm:$0xff]
    %v29 = vld [vmem:[%s1 + $0x30] sm:$0xff]
    %v30 = vld [vmem:[%s1 + $0x38] sm:$0xff]
    %v31 = vld [vmem:[%s1 + $0x40] sm:$0xff]
    %v32 = vld [vmem:[%s1 + $0x48] sm:$0xff]
    %v33 = vld [vmem:[%s1 + $0x50] sm:$0xff]
    %v34 = vld [vmem:[%s1 + $0x58] sm:$0xff]
    %v35 = vld [vmem:[%s1 + $0x60] sm:$0xff]
    %v36 = vld [vmem:[%s1 + $0x68] sm:$0xff]
    %v37 = vld [vmem:[%s1 + $0x70] sm:$0xff]
    %v38 = vld [vmem:[%s1 + $0x78] sm:$0xff]
    %v39 = vld [vmem:[%s1 + $0x80] sm:$0xff]
    %v40 = vld [vmem:[%s1 + $0x88] sm:$0xff]
    %v41 = vld [vmem:[%s1 + $0x90] sm:$0xff]
    %v42 = vld [vmem:[%s1 + $0x98] sm:$0xff]
    %v43 = vld [vmem:[%s1 + $0xa0] sm:$0xff]
    %v44 = vld [vmem:[%s1 + $0xa8] sm:$0xff]
    %v45 = vld [vmem:[%s1 + $0xb0] sm:$0xff]
    %v46 = vld [vmem:[%s1 + $0xb8] sm:$0xff]
    %v47 = vld [vmem:[%s1 + $0xc0] sm:$0xff]
    %v48 = vld [vmem:[%s1 + $0xc8] sm:$0xff]
    %v49 = vld [vmem:[%s1 + $0xd0] sm:$0xff]
    %v50 = vld [vmem:[%s1 + $0xd8] sm:$0xff]
    %v51 = vld [vmem:[%s1 + $0xe0] sm:$0xff]
    %v52 = vld [vmem:[%s1 + $0xe8] sm:$0xff]
    %v53 = vld [vmem:[%s1 + $0xf0] sm:$0xff]
    %v54 = vld [vmem:[%s1 + $0xf8] sm:$0xff]
    %v55 = vld [vmem:[%s1 + $0x100] sm:$0xff]
    %v56 = vld [vmem:[%s1 + $0x108] sm:$0xff]
    %v57 = vld [vmem:[%s1 + $0x110] sm:$0xff]
    %v58 = vld [vmem:[%s1 + $0x118] sm:$0xff]
    %v59 = vld [vmem:[%s1 + $0x120] sm:$0xff]
    %v60 = vld [vmem:[%s1 + $0x128] sm:$0xff]
    %v61 = vld [vmem:[%s1 + $0x130] sm:$0xff]
    %v62 = vld [vmem:[%s1 + $0x138] sm:$0xff]
    %v63 = vld [vmem:[%s1 + $0x140] sm:$0xff]
    %v64 = vld [vmem:[%s1 + $0x148] sm:$0xff]
    %v65 = vld [vmem:[%s1 + $0x150] sm:$0xff]
    %v66 = vld [vmem:[%s1 + $0x158] sm:$0xff]
    %v67 = vld [vmem:[%s1 + $0x160] sm:$0xff]
    %v68 = vld [vmem:[%s1 + $0x168] sm:$0xff]
    %v69 = vld [vmem:[%s1 + $0x170] sm:$0xff]
    %v70 = vld [vmem:[%s1 + $0x178] sm:$0xff]
    %v71 = vld [vmem:[%s1 + $0x180] sm:$0xff]
    %v72 = vld [vmem:[%s1 + $0x188] sm:$0xff]
    %v73 = vld [vmem:[%s1 + $0x190] sm:$0xff]
    %v74 = vld [vmem:[%s1 + $0x198] sm:$0xff]
    %v75 = vld [vmem:[%s1 + $0x1a0] sm:$0xff]
    %v76 = vld [vmem:[%s1 + $0x1a8] sm:$0xff]
    %v77 = vld [vmem:[%s1 + $0x1b0] sm:$0xff]
    %v78 = vld [vmem:[%s1 + $0x1b8] sm:$0xff]
    %v79 = vld [vmem:[%s1 + $0x1c0] sm:$0xff]
    %v80 = vld [vmem:[%s1 + $0x1c8] sm:$0xff]
    %v81 = vld [vmem:[%s1 + $0x1d0] sm:$0xff]
    %v82 = vld [vmem:[%s1 + $0x1d8] sm:$0xff]
    %v83 = vld [vmem:[%s1 + $0x1e0] sm:$0xff]
    %v84 = vld [vmem:[%s1 + $0x1e8] sm:$0xff]
    %v85 = vld [vmem:[%s1 + $0x1f0] sm:$0xff]
    %v86 = vld [vmem:[%s1 + $0x1f8] sm:$0xff]
    %v87 = vld [vmem:[%s2] sm:$0xf]
    %v89 = vlaneseq
    %v90 = vshrl.u32 %v89, 7
    %v91 = vsub.s32 0, %v90
    %v92 = vrot.slane %v87, %v91
    %v93 = vlaneseq
    %v94 = vshrl.u32 %v93, 7
    %v95 = vsub.s32 1, %v94
    %v96 = vrot.slane %v87, %v95
    %v97 = vlaneseq
    %v98 = vshrl.u32 %v97, 7
    %v99 = vsub.s32 2, %v98
    %v100 = vrot.slane %v87, %v99
    %v101 = vlaneseq
    %v102 = vshrl.u32 %v101, 7
    %v103 = vsub.s32 3, %v102
    %v104 = vrot.slane %v87, %v103
    %v111 = vunpack.c.l.s4 1966171168
    %v112 = vunpack.c.0.s8 %v111
    %v113 = vlaneseq
    %v114 = vshrl.u32 %v113, 7
    %v115 = vsub.s32 %v112, %v114
    %v116 = vrot.slane %v22, %v115
    %v117 = vcombine.high %v116, %v116
    %v119 = vunpack.c.l.s4 1966171168
    %v120 = vunpack.c.0.s8 %v119
    %v121 = vlaneseq
    %v122 = vshrl.u32 %v121, 7
    %v123 = vsub.s32 %v120, %v122
    %v124 = vrot.slane %v116, %v123
    %v126 = vunpack.c.l.s4 1966171168
    %v127 = vunpack.c.0.s8 %v126
    %v128 = vlaneseq
    %v129 = vshrl.u32 %v128, 7
    %v130 = vsub.s32 %v127, %v129
    %v131 = vrot.slane %v117, %v130
    %v198 = vunpack.c.l.b16 %v23
    %v199 = vunpack.c.h.b16 %v23
    %v200 = vunpack.c.l.b16 %v24
    %v201 = vunpack.c.h.b16 %v24
    %v202 = vunpack.c.l.b16 %v25
    %v203 = vunpack.c.h.b16 %v25
    %v204 = vunpack.c.l.b16 %v26
    %v205 = vunpack.c.h.b16 %v26
    %v206 = vunpack.c.l.b16 %v27
    %v207 = vunpack.c.h.b16 %v27
    %v208 = vunpack.c.l.b16 %v28
    %v209 = vunpack.c.h.b16 %v28
    %v210 = vunpack.c.l.b16 %v29
    %v211 = vunpack.c.h.b16 %v29
    %v212 = vunpack.c.l.b16 %v30
    %v213 = vunpack.c.h.b16 %v30
    %v214 = vunpack.c.l.b16 %v31
    %v215 = vunpack.c.h.b16 %v31
    %v216 = vunpack.c.l.b16 %v32
    %v217 = vunpack.c.h.b16 %v32
    %v218 = vunpack.c.l.b16 %v33
    %v219 = vunpack.c.h.b16 %v33
    %v220 = vunpack.c.l.b16 %v34
    %v221 = vunpack.c.h.b16 %v34
    %v222 = vunpack.c.l.b16 %v35
    %v223 = vunpack.c.h.b16 %v35
    %v224 = vunpack.c.l.b16 %v36
    %v225 = vunpack.c.h.b16 %v36
    %v226 = vunpack.c.l.b16 %v37
    %v227 = vunpack.c.h.b16 %v37
    %v228 = vunpack.c.l.b16 %v38
    %v229 = vunpack.c.h.b16 %v38
    %v230 = vunpack.c.l.b16 %v39
    %v231 = vunpack.c.h.b16 %v39
    %v232 = vunpack.c.l.b16 %v40
    %v233 = vunpack.c.h.b16 %v40
    %v234 = vunpack.c.l.b16 %v41
    %v235 = vunpack.c.h.b16 %v41
    %v236 = vunpack.c.l.b16 %v42
    %v237 = vunpack.c.h.b16 %v42
    %v238 = vunpack.c.l.b16 %v43
    %v239 = vunpack.c.h.b16 %v43
    %v240 = vunpack.c.l.b16 %v44
    %v241 = vunpack.c.h.b16 %v44
    %v242 = vunpack.c.l.b16 %v45
    %v243 = vunpack.c.h.b16 %v45
    %v244 = vunpack.c.l.b16 %v46
    %v245 = vunpack.c.h.b16 %v46
    %v246 = vunpack.c.l.b16 %v47
    %v247 = vunpack.c.h.b16 %v47
    %v248 = vunpack.c.l.b16 %v48
    %v249 = vunpack.c.h.b16 %v48
    %v250 = vunpack.c.l.b16 %v49
    %v251 = vunpack.c.h.b16 %v49
    %v252 = vunpack.c.l.b16 %v50
    %v253 = vunpack.c.h.b16 %v50
    %v254 = vunpack.c.l.b16 %v51
    %v255 = vunpack.c.h.b16 %v51
    %v256 = vunpack.c.l.b16 %v52
    %v257 = vunpack.c.h.b16 %v52
    %v258 = vunpack.c.l.b16 %v53
    %v259 = vunpack.c.h.b16 %v53
    %v260 = vunpack.c.l.b16 %v54
    %v261 = vunpack.c.h.b16 %v54
    %v262 = vunpack.c.l.b16 %v55
    %v263 = vunpack.c.h.b16 %v55
    %v264 = vunpack.c.l.b16 %v56
    %v265 = vunpack.c.h.b16 %v56
    %v266 = vunpack.c.l.b16 %v57
    %v267 = vunpack.c.h.b16 %v57
    %v268 = vunpack.c.l.b16 %v58
    %v269 = vunpack.c.h.b16 %v58
    %v270 = vunpack.c.l.b16 %v59
    %v271 = vunpack.c.h.b16 %v59
    %v272 = vunpack.c.l.b16 %v60
    %v273 = vunpack.c.h.b16 %v60
    %v274 = vunpack.c.l.b16 %v61
    %v275 = vunpack.c.h.b16 %v61
    %v276 = vunpack.c.l.b16 %v62
    %v277 = vunpack.c.h.b16 %v62
    %v278 = vunpack.c.l.b16 %v63
    %v279 = vunpack.c.h.b16 %v63
    %v280 = vunpack.c.l.b16 %v64
    %v281 = vunpack.c.h.b16 %v64
    %v282 = vunpack.c.l.b16 %v65
    %v283 = vunpack.c.h.b16 %v65
    %v284 = vunpack.c.l.b16 %v66
    %v285 = vunpack.c.h.b16 %v66
    %v286 = vunpack.c.l.b16 %v67
    %v287 = vunpack.c.h.b16 %v67
    %v288 = vunpack.c.l.b16 %v68
    %v289 = vunpack.c.h.b16 %v68
    %v290 = vunpack.c.l.b16 %v69
    %v291 = vunpack.c.h.b16 %v69
    %v292 = vunpack.c.l.b16 %v70
    %v293 = vunpack.c.h.b16 %v70
    %v294 = vunpack.c.l.b16 %v71
    %v295 = vunpack.c.h.b16 %v71
    %v296 = vunpack.c.l.b16 %v72
    %v297 = vunpack.c.h.b16 %v72
    %v298 = vunpack.c.l.b16 %v73
    %v299 = vunpack.c.h.b16 %v73
    %v300 = vunpack.c.l.b16 %v74
    %v301 = vunpack.c.h.b16 %v74
    %v302 = vunpack.c.l.b16 %v75
    %v303 = vunpack.c.h.b16 %v75
    %v304 = vunpack.c.l.b16 %v76
    %v305 = vunpack.c.h.b16 %v76
    %v306 = vunpack.c.l.b16 %v77
    %v307 = vunpack.c.h.b16 %v77
    %v308 = vunpack.c.l.b16 %v78
    %v309 = vunpack.c.h.b16 %v78
    %v310 = vunpack.c.l.b16 %v79
    %v311 = vunpack.c.h.b16 %v79
    %v312 = vunpack.c.l.b16 %v80
    %v313 = vunpack.c.h.b16 %v80
    %v314 = vunpack.c.l.b16 %v81
    %v315 = vunpack.c.h.b16 %v81
    %v316 = vunpack.c.l.b16 %v82
    %v317 = vunpack.c.h.b16 %v82
    %v318 = vunpack.c.l.b16 %v83
    %v319 = vunpack.c.h.b16 %v83
    %v320 = vunpack.c.l.b16 %v84
    %v321 = vunpack.c.h.b16 %v84
    %v322 = vunpack.c.l.b16 %v85
    %v323 = vunpack.c.h.b16 %v85
    %v324 = vunpack.c.l.b16 %v86
    %v325 = vunpack.c.h.b16 %v86
    %v326 = vpack.c.b16 %v202, %v198
    %v327 = vpack.c.b16 %v203, %v199
    %v328 = vpack.c.b16 %v204, %v200
    %v329 = vpack.c.b16 %v205, %v201
    %v330 = vpack.c.b16 %v210, %v206
    %v331 = vpack.c.b16 %v211, %v207
    %v332 = vpack.c.b16 %v212, %v208
    %v333 = vpack.c.b16 %v213, %v209
    %v334 = vpack.c.b16 %v218, %v214
    %v335 = vpack.c.b16 %v219, %v215
    %v336 = vpack.c.b16 %v220, %v216
    %v337 = vpack.c.b16 %v221, %v217
    %v338 = vpack.c.b16 %v226, %v222
    %v339 = vpack.c.b16 %v227, %v223
    %v340 = vpack.c.b16 %v228, %v224
    %v341 = vpack.c.b16 %v229, %v225
    %v342 = vpack.c.b16 %v234, %v230
    %v343 = vpack.c.b16 %v235, %v231
    %v344 = vpack.c.b16 %v236, %v232
    %v345 = vpack.c.b16 %v237, %v233
    %v346 = vpack.c.b16 %v242, %v238
    %v347 = vpack.c.b16 %v243, %v239
    %v348 = vpack.c.b16 %v244, %v240
    %v349 = vpack.c.b16 %v245, %v241
    %v350 = vpack.c.b16 %v250, %v246
    %v351 = vpack.c.b16 %v251, %v247
    %v352 = vpack.c.b16 %v252, %v248
    %v353 = vpack.c.b16 %v253, %v249
    %v354 = vpack.c.b16 %v258, %v254
    %v355 = vpack.c.b16 %v259, %v255
    %v356 = vpack.c.b16 %v260, %v256
    %v357 = vpack.c.b16 %v261, %v257
    %v358 = vpack.c.b16 %v266, %v262
    %v359 = vpack.c.b16 %v267, %v263
    %v360 = vpack.c.b16 %v268, %v264
    %v361 = vpack.c.b16 %v269, %v265
    %v362 = vpack.c.b16 %v274, %v270
    %v363 = vpack.c.b16 %v275, %v271
    %v364 = vpack.c.b16 %v276, %v272
    %v365 = vpack.c.b16 %v277, %v273
    %v366 = vpack.c.b16 %v282, %v278
    %v367 = vpack.c.b16 %v283, %v279
    %v368 = vpack.c.b16 %v284, %v280
    %v369 = vpack.c.b16 %v285, %v281
    %v370 = vpack.c.b16 %v290, %v286
    %v371 = vpack.c.b16 %v291, %v287
    %v372 = vpack.c.b16 %v292, %v288
    %v373 = vpack.c.b16 %v293, %v289
    %v374 = vpack.c.b16 %v298, %v294
    %v375 = vpack.c.b16 %v299, %v295
    %v376 = vpack.c.b16 %v300, %v296
    %v377 = vpack.c.b16 %v301, %v297
    %v378 = vpack.c.b16 %v306, %v302
    %v379 = vpack.c.b16 %v307, %v303
    %v380 = vpack.c.b16 %v308, %v304
    %v381 = vpack.c.b16 %v309, %v305
    %v382 = vpack.c.b16 %v314, %v310
    %v383 = vpack.c.b16 %v315, %v311
    %v384 = vpack.c.b16 %v316, %v312
    %v385 = vpack.c.b16 %v317, %v313
    %v386 = vpack.c.b16 %v322, %v318
    %v387 = vpack.c.b16 %v323, %v319
    %v388 = vpack.c.b16 %v324, %v320
    %v389 = vpack.c.b16 %v325, %v321
    %454 = vmatprep.subr.bf16.mxu0 %v327
    %455 = vmatpush1.bf16.msra.mxu0 %v326
    %456 = vmatprep.subr.bf16.mxu0 %v331
    %457 = vmatpush1.bf16.msra.mxu0 %v330
    %458 = vmatprep.subr.bf16.mxu0 %v335
    %459 = vmatpush1.bf16.msra.mxu0 %v334
    %460 = vmatprep.subr.bf16.mxu0 %v339
    %461 = vmatpush1.bf16.msra.mxu0 %v338
    %462 = vmatprep.subr.bf16.mxu0 %v343
    %463 = vmatpush1.bf16.msra.mxu0 %v342
    %464 = vmatprep.subr.bf16.mxu0 %v347
    %465 = vmatpush1.bf16.msra.mxu0 %v346
    %466 = vmatprep.subr.bf16.mxu0 %v351
    %467 = vmatpush1.bf16.msra.mxu0 %v350
    %468 = vmatprep.subr.bf16.mxu0 %v355
    %469 = vmatpush1.bf16.msra.mxu0 %v354
    %470 = vmatprep.subr.bf16.mxu0 %v359
    %471 = vmatpush1.bf16.msra.mxu0 %v358
    %472 = vmatprep.subr.bf16.mxu0 %v363
    %473 = vmatpush1.bf16.msra.mxu0 %v362
    %474 = vmatprep.subr.bf16.mxu0 %v367
    %475 = vmatpush1.bf16.msra.mxu0 %v366
    %476 = vmatprep.subr.bf16.mxu0 %v371
    %477 = vmatpush1.bf16.msra.mxu0 %v370
    %478 = vmatprep.subr.bf16.mxu0 %v375
    %479 = vmatpush1.bf16.msra.mxu0 %v374
    %480 = vmatprep.subr.bf16.mxu0 %v379
    %481 = vmatpush1.bf16.msra.mxu0 %v378
    %482 = vmatprep.subr.bf16.mxu0 %v383
    %483 = vmatpush1.bf16.msra.mxu0 %v382
    %484 = vmatprep.subr.bf16.mxu0 %v387
    %485 = vmatpush1.bf16.msra.mxu0 %v386
    %486 = vmatprep.mubr.bf16.mxu0 %v131
    %487 = vmatmul.mubr.bf16.gmra.mrb[0].mxu0 %v124
    %v488 = vpop.f32.mrb[0].mxu0
    %v489 = vadd.f32 %v92, %v488
    %v490 = vpop.f32.mrb[0].mxu0
    %v491 = vadd.f32 %v96, %v490
    %v492 = vpop.f32.mrb[0].mxu0
    %v493 = vpop.f32.mrb[0].mxu0
    %494 = vdwg.mxu0
    %495 = vmatprep.subr.bf16.mxu0 %v329
    %496 = vmatpush1.bf16.msra.mxu0 %v328
    %497 = vmatprep.subr.bf16.mxu0 %v333
    %498 = vmatpush1.bf16.msra.mxu0 %v332
    %499 = vmatprep.subr.bf16.mxu0 %v337
    %500 = vmatpush1.bf16.msra.mxu0 %v336
    %501 = vmatprep.subr.bf16.mxu0 %v341
    %502 = vmatpush1.bf16.msra.mxu0 %v340
    %503 = vmatprep.subr.bf16.mxu0 %v345
    %504 = vmatpush1.bf16.msra.mxu0 %v344
    %505 = vmatprep.subr.bf16.mxu0 %v349
    %506 = vmatpush1.bf16.msra.mxu0 %v348
    %507 = vmatprep.subr.bf16.mxu0 %v353
    %508 = vmatpush1.bf16.msra.mxu0 %v352
    %509 = vmatprep.subr.bf16.mxu0 %v357
    %510 = vmatpush1.bf16.msra.mxu0 %v356
    %511 = vmatprep.subr.bf16.mxu0 %v361
    %512 = vmatpush1.bf16.msra.mxu0 %v360
    %513 = vmatprep.subr.bf16.mxu0 %v365
    %514 = vmatpush1.bf16.msra.mxu0 %v364
    %515 = vmatprep.subr.bf16.mxu0 %v369
    %516 = vmatpush1.bf16.msra.mxu0 %v368
    %517 = vmatprep.subr.bf16.mxu0 %v373
    %518 = vmatpush1.bf16.msra.mxu0 %v372
    %519 = vmatprep.subr.bf16.mxu0 %v377
    %520 = vmatpush1.bf16.msra.mxu0 %v376
    %521 = vmatprep.subr.bf16.mxu0 %v381
    %522 = vmatpush1.bf16.msra.mxu0 %v380
    %523 = vmatprep.subr.bf16.mxu0 %v385
    %524 = vmatpush1.bf16.msra.mxu0 %v384
    %525 = vmatprep.subr.bf16.mxu0 %v389
    %526 = vmatpush1.bf16.msra.mxu0 %v388
    %527 = vmatprep.mubr.bf16.mxu0 %v131
    %528 = vmatmul.mubr.bf16.gmra.mrb[0].mxu0 %v124
    %v529 = vpop.f32.mrb[0].mxu0
    %v530 = vadd.f32 %v100, %v529
    %v531 = vpop.f32.mrb[0].mxu0
    %v532 = vadd.f32 %v104, %v531
    %v533 = vpop.f32.mrb[0].mxu0
    %v534 = vpop.f32.mrb[0].mxu0
    %535 = vdwg.mxu0
    %v536 = vmax.f32 %v489, 0.0
    %v537 = vmax.f32 %v491, 0.0
    %v538 = vmax.f32 %v530, 0.0
    %v539 = vmax.f32 %v532, 0.0
    %v540 = vpack.c.bf16 %v536, %v536
    %v541 = vpack.c.bf16 %v537, %v537
    %v542 = vpack.c.bf16 %v538, %v538
    %v543 = vpack.c.bf16 %v539, %v539
    %v544 = vld [vmem:[%s3] sm:$0xf]
    %v545 = vld [vmem:[%s3 + $0x4] sm:$0xf]
    %v546 = vld [vmem:[%s3 + $0x8] sm:$0xf]
    %v547 = vld [vmem:[%s3 + $0xc] sm:$0xf]
    %v548 = vld [vmem:[%s3 + $0x10] sm:$0xf]
    %v549 = vld [vmem:[%s3 + $0x14] sm:$0xf]
    %v550 = vld [vmem:[%s3 + $0x18] sm:$0xf]
    %v551 = vld [vmem:[%s3 + $0x1c] sm:$0xf]
    %v552 = vld [vmem:[%s3 + $0x20] sm:$0xf]
    %v553 = vld [vmem:[%s3 + $0x24] sm:$0xf]
    %v554 = vld [vmem:[%s3 + $0x28] sm:$0xf]
    %v555 = vld [vmem:[%s3 + $0x2c] sm:$0xf]
    %v556 = vld [vmem:[%s3 + $0x30] sm:$0xf]
    %v557 = vld [vmem:[%s3 + $0x34] sm:$0xf]
    %v558 = vld [vmem:[%s3 + $0x38] sm:$0xf]
    %v559 = vld [vmem:[%s3 + $0x3c] sm:$0xf]
    %v560 = vld [vmem:[%s3 + $0x40] sm:$0xf]
    %v561 = vld [vmem:[%s3 + $0x44] sm:$0xf]
    %v562 = vld [vmem:[%s3 + $0x48] sm:$0xf]
    %v563 = vld [vmem:[%s3 + $0x4c] sm:$0xf]
    %v564 = vld [vmem:[%s3 + $0x50] sm:$0xf]
    %v565 = vld [vmem:[%s3 + $0x54] sm:$0xf]
    %v566 = vld [vmem:[%s3 + $0x58] sm:$0xf]
    %v567 = vld [vmem:[%s3 + $0x5c] sm:$0xf]
    %v568 = vld [vmem:[%s3 + $0x60] sm:$0xf]
    %v569 = vld [vmem:[%s3 + $0x64] sm:$0xf]
    %v570 = vld [vmem:[%s3 + $0x68] sm:$0xf]
    %v571 = vld [vmem:[%s3 + $0x6c] sm:$0xf]
    %v572 = vld [vmem:[%s3 + $0x70] sm:$0xf]
    %v573 = vld [vmem:[%s3 + $0x74] sm:$0xf]
    %v574 = vld [vmem:[%s3 + $0x78] sm:$0xf]
    %v575 = vld [vmem:[%s3 + $0x7c] sm:$0xf]
    %v576 = vld [vmem:[%s3 + $0x80] sm:$0xf]
    %v577 = vld [vmem:[%s3 + $0x84] sm:$0xf]
    %v578 = vld [vmem:[%s3 + $0x88] sm:$0xf]
    %v579 = vld [vmem:[%s3 + $0x8c] sm:$0xf]
    %v580 = vld [vmem:[%s3 + $0x90] sm:$0xf]
    %v581 = vld [vmem:[%s3 + $0x94] sm:$0xf]
    %v582 = vld [vmem:[%s3 + $0x98] sm:$0xf]
    %v583 = vld [vmem:[%s3 + $0x9c] sm:$0xf]
    %v584 = vld [vmem:[%s3 + $0xa0] sm:$0xf]
    %v585 = vld [vmem:[%s3 + $0xa4] sm:$0xf]
    %v586 = vld [vmem:[%s3 + $0xa8] sm:$0xf]
    %v587 = vld [vmem:[%s3 + $0xac] sm:$0xf]
    %v588 = vld [vmem:[%s3 + $0xb0] sm:$0xf]
    %v589 = vld [vmem:[%s3 + $0xb4] sm:$0xf]
    %v590 = vld [vmem:[%s3 + $0xb8] sm:$0xf]
    %v591 = vld [vmem:[%s3 + $0xbc] sm:$0xf]
    %v592 = vld [vmem:[%s3 + $0xc0] sm:$0xf]
    %v593 = vld [vmem:[%s3 + $0xc4] sm:$0xf]
    %v594 = vld [vmem:[%s3 + $0xc8] sm:$0xf]
    %v595 = vld [vmem:[%s3 + $0xcc] sm:$0xf]
    %v596 = vld [vmem:[%s3 + $0xd0] sm:$0xf]
    %v597 = vld [vmem:[%s3 + $0xd4] sm:$0xf]
    %v598 = vld [vmem:[%s3 + $0xd8] sm:$0xf]
    %v599 = vld [vmem:[%s3 + $0xdc] sm:$0xf]
    %v600 = vld [vmem:[%s3 + $0xe0] sm:$0xf]
    %v601 = vld [vmem:[%s3 + $0xe4] sm:$0xf]
    %v602 = vld [vmem:[%s3 + $0xe8] sm:$0xf]
    %v603 = vld [vmem:[%s3 + $0xec] sm:$0xf]
    %v604 = vld [vmem:[%s3 + $0xf0] sm:$0xf]
    %v605 = vld [vmem:[%s3 + $0xf4] sm:$0xf]
    %v606 = vld [vmem:[%s3 + $0xf8] sm:$0xf]
    %v607 = vld [vmem:[%s3 + $0xfc] sm:$0xf]
    %v608 = vld [vmem:[%s4] sm:$0x1]
    %v610 = vlaneseq
    %v611 = vshrl.u32 %v610, 7
    %v612 = vsub.s32 0, %v611
    %v613 = vrot.slane %v608, %v612
    %v679 = vunpack.c.l.b16 %v544
    %v680 = vunpack.c.l.b16 %v545
    %v681 = vunpack.c.l.b16 %v546
    %v682 = vunpack.c.l.b16 %v547
    %v683 = vunpack.c.l.b16 %v548
    %v684 = vunpack.c.l.b16 %v549
    %v685 = vunpack.c.l.b16 %v550
    %v686 = vunpack.c.l.b16 %v551
    %v687 = vunpack.c.l.b16 %v552
    %v688 = vunpack.c.l.b16 %v553
    %v689 = vunpack.c.l.b16 %v554
    %v690 = vunpack.c.l.b16 %v555
    %v691 = vunpack.c.l.b16 %v556
    %v692 = vunpack.c.l.b16 %v557
    %v693 = vunpack.c.l.b16 %v558
    %v694 = vunpack.c.l.b16 %v559
    %v695 = vunpack.c.l.b16 %v560
    %v696 = vunpack.c.l.b16 %v561
    %v697 = vunpack.c.l.b16 %v562
    %v698 = vunpack.c.l.b16 %v563
    %v699 = vunpack.c.l.b16 %v564
    %v700 = vunpack.c.l.b16 %v565
    %v701 = vunpack.c.l.b16 %v566
    %v702 = vunpack.c.l.b16 %v567
    %v703 = vunpack.c.l.b16 %v568
    %v704 = vunpack.c.l.b16 %v569
    %v705 = vunpack.c.l.b16 %v570
    %v706 = vunpack.c.l.b16 %v571
    %v707 = vunpack.c.l.b16 %v572
    %v708 = vunpack.c.l.b16 %v573
    %v709 = vunpack.c.l.b16 %v574
    %v710 = vunpack.c.l.b16 %v575
    %v711 = vunpack.c.l.b16 %v576
    %v712 = vunpack.c.l.b16 %v577
    %v713 = vunpack.c.l.b16 %v578
    %v714 = vunpack.c.l.b16 %v579
    %v715 = vunpack.c.l.b16 %v580
    %v716 = vunpack.c.l.b16 %v581
    %v717 = vunpack.c.l.b16 %v582
    %v718 = vunpack.c.l.b16 %v583
    %v719 = vunpack.c.l.b16 %v584
    %v720 = vunpack.c.l.b16 %v585
    %v721 = vunpack.c.l.b16 %v586
    %v722 = vunpack.c.l.b16 %v587
    %v723 = vunpack.c.l.b16 %v588
    %v724 = vunpack.c.l.b16 %v589
    %v725 = vunpack.c.l.b16 %v590
    %v726 = vunpack.c.l.b16 %v591
    %v727 = vunpack.c.l.b16 %v592
    %v728 = vunpack.c.l.b16 %v593
    %v729 = vunpack.c.l.b16 %v594
    %v730 = vunpack.c.l.b16 %v595
    %v731 = vunpack.c.l.b16 %v596
    %v732 = vunpack.c.l.b16 %v597
    %v733 = vunpack.c.l.b16 %v598
    %v734 = vunpack.c.l.b16 %v599
    %v735 = vunpack.c.l.b16 %v600
    %v736 = vunpack.c.l.b16 %v601
    %v737 = vunpack.c.l.b16 %v602
    %v738 = vunpack.c.l.b16 %v603
    %v739 = vunpack.c.l.b16 %v604
    %v740 = vunpack.c.l.b16 %v605
    %v741 = vunpack.c.l.b16 %v606
    %v742 = vunpack.c.l.b16 %v607
    %v743 = vpack.c.b16 %v680, %v679
    %v744 = vpack.c.b16 %v682, %v681
    %v745 = vpack.c.b16 %v684, %v683
    %v746 = vpack.c.b16 %v686, %v685
    %v747 = vpack.c.b16 %v688, %v687
    %v748 = vpack.c.b16 %v690, %v689
    %v749 = vpack.c.b16 %v692, %v691
    %v750 = vpack.c.b16 %v694, %v693
    %v751 = vpack.c.b16 %v696, %v695
    %v752 = vpack.c.b16 %v698, %v697
    %v753 = vpack.c.b16 %v700, %v699
    %v754 = vpack.c.b16 %v702, %v701
    %v755 = vpack.c.b16 %v704, %v703
    %v756 = vpack.c.b16 %v706, %v705
    %v757 = vpack.c.b16 %v708, %v707
    %v758 = vpack.c.b16 %v710, %v709
    %v759 = vpack.c.b16 %v712, %v711
    %v760 = vpack.c.b16 %v714, %v713
    %v761 = vpack.c.b16 %v716, %v715
    %v762 = vpack.c.b16 %v718, %v717
    %v763 = vpack.c.b16 %v720, %v719
    %v764 = vpack.c.b16 %v722, %v721
    %v765 = vpack.c.b16 %v724, %v723
    %v766 = vpack.c.b16 %v726, %v725
    %v767 = vpack.c.b16 %v728, %v727
    %v768 = vpack.c.b16 %v730, %v729
    %v769 = vpack.c.b16 %v732, %v731
    %v770 = vpack.c.b16 %v734, %v733
    %v771 = vpack.c.b16 %v736, %v735
    %v772 = vpack.c.b16 %v738, %v737
    %v773 = vpack.c.b16 %v740, %v739
    %v774 = vpack.c.b16 %v742, %v741
    %807 = vmatprep.subr.bf16.mxu0 0
    %808 = vmatpush1.bf16.msra.mxu0 %v743
    %809 = vmatprep.subr.bf16.mxu0 0
    %810 = vmatpush1.bf16.msra.mxu0 %v744
    %811 = vmatprep.subr.bf16.mxu0 0
    %812 = vmatpush1.bf16.msra.mxu0 %v745
    %813 = vmatprep.subr.bf16.mxu0 0
    %814 = vmatpush1.bf16.msra.mxu0 %v746
    %815 = vmatprep.subr.bf16.mxu0 0
    %816 = vmatpush1.bf16.msra.mxu0 %v747
    %817 = vmatprep.subr.bf16.mxu0 0
    %818 = vmatpush1.bf16.msra.mxu0 %v748
    %819 = vmatprep.subr.bf16.mxu0 0
    %820 = vmatpush1.bf16.msra.mxu0 %v749
    %821 = vmatprep.subr.bf16.mxu0 0
    %822 = vmatpush1.bf16.msra.mxu0 %v750
    %823 = vmatprep.subr.bf16.mxu0 0
    %824 = vmatpush1.bf16.msra.mxu0 %v751
    %825 = vmatprep.subr.bf16.mxu0 0
    %826 = vmatpush1.bf16.msra.mxu0 %v752
    %827 = vmatprep.subr.bf16.mxu0 0
    %828 = vmatpush1.bf16.msra.mxu0 %v753
    %829 = vmatprep.subr.bf16.mxu0 0
    %830 = vmatpush1.bf16.msra.mxu0 %v754
    %831 = vmatprep.subr.bf16.mxu0 0
    %832 = vmatpush1.bf16.msra.mxu0 %v755
    %833 = vmatprep.subr.bf16.mxu0 0
    %834 = vmatpush1.bf16.msra.mxu0 %v756
    %835 = vmatprep.subr.bf16.mxu0 0
    %836 = vmatpush1.bf16.msra.mxu0 %v757
    %837 = vmatprep.subr.bf16.mxu0 0
    %838 = vmatpush1.bf16.msra.mxu0 %v758
    %839 = vmatprep.mubr.bf16.mxu0 %v541
    %840 = vmatmul.mubr.bf16.gmra.mrb[0].mxu0 %v540
    %v841 = vpop.f32.mrb[0].mxu0
    %v842 = vadd.f32 %v613, %v841
    %v843 = vpop.f32.mrb[0].mxu0
    %v844 = vpop.f32.mrb[0].mxu0
    %v845 = vpop.f32.mrb[0].mxu0
    %846 = vdwg.mxu0
    %847 = vmatprep.subr.bf16.mxu0 0
    %848 = vmatpush1.bf16.msra.mxu0 %v759
    %849 = vmatprep.subr.bf16.mxu0 0
    %850 = vmatpush1.bf16.msra.mxu0 %v760
    %851 = vmatprep.subr.bf16.mxu0 0
    %852 = vmatpush1.bf16.msra.mxu0 %v761
    %853 = vmatprep.subr.bf16.mxu0 0
    %854 = vmatpush1.bf16.msra.mxu0 %v762
    %855 = vmatprep.subr.bf16.mxu0 0
    %856 = vmatpush1.bf16.msra.mxu0 %v763
    %857 = vmatprep.subr.bf16.mxu0 0
    %858 = vmatpush1.bf16.msra.mxu0 %v764
    %859 = vmatprep.subr.bf16.mxu0 0
    %860 = vmatpush1.bf16.msra.mxu0 %v765
    %861 = vmatprep.subr.bf16.mxu0 0
    %862 = vmatpush1.bf16.msra.mxu0 %v766
    %863 = vmatprep.subr.bf16.mxu0 0
    %864 = vmatpush1.bf16.msra.mxu0 %v767
    %865 = vmatprep.subr.bf16.mxu0 0
    %866 = vmatpush1.bf16.msra.mxu0 %v768
    %867 = vmatprep.subr.bf16.mxu0 0
    %868 = vmatpush1.bf16.msra.mxu0 %v769
    %869 = vmatprep.subr.bf16.mxu0 0
    %870 = vmatpush1.bf16.msra.mxu0 %v770
    %871 = vmatprep.subr.bf16.mxu0 0
    %872 = vmatpush1.bf16.msra.mxu0 %v771
    %873 = vmatprep.subr.bf16.mxu0 0
    %874 = vmatpush1.bf16.msra.mxu0 %v772
    %875 = vmatprep.subr.bf16.mxu0 0
    %876 = vmatpush1.bf16.msra.mxu0 %v773
    %877 = vmatprep.subr.bf16.mxu0 0
    %878 = vmatpush1.bf16.msra.mxu0 %v774
    %879 = vmatprep.mubr.bf16.mxu0 %v543
    %880 = vmatmul.mubr.bf16.gmra.mrb[0].mxu0 %v542
    %v881 = vpop.f32.mrb[0].mxu0
    %v882 = vadd.f32 %v842, %v881
    %v883 = vpop.f32.mrb[0].mxu0
    %v884 = vpop.f32.mrb[0].mxu0
    %v885 = vpop.f32.mrb[0].mxu0
    %886 = vdwg.mxu0
    %887 = vst [vmem:[#allocation2] sm:$0x3] %v882
    // Predicated region
    $region22: #{dqn_forward.7} parent=1 // pred_check
      _
    $region23: #{dqn_forward.7} parent=1 // pred_check_branch
      %889 = sbr.rel (0) target = $region25
    $region24: #{dqn_forward.7} parent=1 // pred_region
      %s891 = ssub.s32 32, 32
      %892 = vsyncadd [#allocation3], %s891
      %s894 = sshll.u32 [#allocation2], 4
      %s895 = int_to_ptr.vmem [resolvable:$true] %s894
      %897 = dma.vmem_to_hbm [thread:$0]  %s895, 32, %s5, [#allocation3]
    $region25: #{dqn_forward.7} parent=1 // pred_fallthru
      _
    // Predicated region
    $region26: #{dqn_forward.7} parent=1 // pred_check
      _
    $region27: #{dqn_forward.7} parent=1 // pred_check_branch
      %899 = sbr.rel (0) target = $region29
    $region28: #{dqn_forward.7} parent=1 // pred_region
      %900 = dma.done [#allocation3], 32
    $region29: #{dqn_forward.7} parent=1 // pred_fallthru
      _
    %901 = vsyncpa [#allocation3], 1

</llo_original>
